<compile_context>
chip_gen: v5e
topology: v5e:2x2
jax: 0.10.0
libtpu: 0.0.40
codegen_flags: <defaults>
</compile_context>

<pallas_src>
import functools

import numpy as np
import jax
import jax.numpy as jnp
from jax.experimental import pallas as pl
from jax.experimental.pallas import tpu as pltpu


def _bottleneck_kernel(x_ref, w1_ref, w2_ref, w3_ref, b1_ref, b2_ref, b3_ref,
                       *rest, has_downsample):
    """Nb batch elements per grid step. All convs fused in a single kernel."""
    if has_downsample:
        w4_ref, b4_ref, o_ref, shifts_ref = rest
    else:
        o_ref, shifts_ref = rest

    Nb, Ho, Wo, Cin = x_ref.shape
    Cmid = w1_ref.shape[1]
    Cout = w3_ref.shape[1]
    M = Nb * Ho * Wo

    x_m = x_ref[...].reshape(M, Cin)                                   # bf16 (MXU lhs)

    # conv1 (1x1, stride already applied by wrapper); bn1 folded -> bias + relu
    out1 = jnp.dot(x_m, w1_ref[...], preferred_element_type=jnp.float32)
    out1 = jnp.maximum(out1 + b1_ref[...], 0.0).reshape(Nb, Ho, Wo, Cmid)

    # ---------------- conv2: 3x3, stride 1, pad 1 ----------------
    # Scratch layout (4-D): variant dx occupies rows [dx*Nb, (dx+1)*Nb) of axis 0,
    # H-padded by one row top/bottom.  Variant dx holds padded_in(:, x + dx) so the
    # nine taps below are pure H-slices (no sublane-misaligned slices on the hot path).
    zrow = jnp.zeros((3 * Nb, 1, Wo, Cmid), jnp.float32)
    shifts_ref[:, 0:1, :, :] = zrow                       # top halo row
    shifts_ref[:, Ho + 1:Ho + 2, :, :] = zrow             # bottom halo row
    zcol = jnp.zeros((Nb, Ho + 2, 1, Cmid), jnp.float32)
    shifts_ref[0:Nb, :, 0:1, :] = zcol                    # left pad col (dx=0 variant)
    shifts_ref[2 * Nb:3 * Nb, :, Wo - 1:Wo, :] = zcol     # right pad col (dx=2 variant)

    shifts_ref[0:Nb, 1:Ho + 1, 1:Wo, :] = out1[:, :, 0:Wo - 1, :]      # reads col x-1
    shifts_ref[Nb:2 * Nb, 1:Ho + 1, :, :] = out1                       # reads col x
    shifts_ref[2 * Nb:3 * Nb, 1:Ho + 1, 0:Wo - 1, :] = out1[:, :, 1:Wo, :]  # reads col x+1

    acc = jnp.zeros((M, Cmid), jnp.float32)
    for dy in range(3):
        for dx in range(3):
            patch = shifts_ref[dx * Nb:(dx + 1) * Nb, dy:dy + Ho, :, :].reshape(M, Cmid)
            acc = acc + jnp.dot(patch.astype(jnp.bfloat16), w2_ref[dy * 3 + dx],
                                preferred_element_type=jnp.float32)
    out2 = jnp.maximum(acc + b2_ref[...], 0.0)

    # conv3 (1x1); bn3 folded
    out3 = jnp.dot(out2.astype(jnp.bfloat16), w3_ref[...],
                   preferred_element_type=jnp.float32) + b3_ref[...]

    # residual branch
    if has_downsample:
        ident = jnp.dot(x_m, w4_ref[...],
                        preferred_element_type=jnp.float32) + b4_ref[...]
    else:
        ident = x_m.astype(jnp.float32)          # stride == 1 and Cin == Cout

    o_ref[...] = jnp.maximum(out3 + ident, 0.0).reshape(Nb, Ho, Wo, Cout).astype(o_ref.dtype)


def _fold_bn(w_oihw, bn):
    """Fold FrozenBatchNorm2d into the conv weight along the output-channel axis.

    NOTE: this module's FrozenBatchNorm2d uses running_var.rsqrt() with NO eps.
    """
    gamma, beta, mean, var = bn
    scale = gamma * jax.lax.rsqrt(var)
    bias = beta - mean * scale
    return w_oihw * scale[:, None, None, None], bias.reshape(1, -1).astype(jnp.float32)


def _pick_nb(N, Ho, Wo, Cin, Cmid, Cout, vmem_budget=40 * 1024 * 1024):
    """Batch elements per grid step: fill the MXU M dim without blowing VMEM."""
    nb = 1
    for cand in range(1, N + 1):
        if N % cand:
            continue
        rows = cand * Ho * Wo
        est = (2 * rows * Cin * 2                         # double-buffered bf16 input
               + 2 * rows * Cout * 4                      # double-buffered f32 output
               + 3 * cand * (Ho + 2) * Wo * Cmid * 4      # conv2 shift scratch (f32)
               + 3 * rows * max(Cmid, Cout) * 4)          # live f32 intermediates
        if est > vmem_budget:
            break
        nb = cand
        if rows >= 512:
            break
    return nb


def spatial_bottleneck(x_nchw, params, stride, has_downsample):
    N, Cin, H, W = x_nchw.shape
    Cmid = params['conv1_w'].shape[0]
    Cout = params['conv3_w'].shape[0]

    if not has_downsample and (stride != 1 or Cin != Cout):
        raise ValueError("identity residual path requires stride == 1 and Cin == Cout")

    # NHWC inside the kernel; the 1x1-conv stride is pure spatial subsampling.
    x_nhwc = jnp.transpose(x_nchw, (0, 2, 3, 1))
    x_s = x_nhwc[:, ::stride, ::stride, :].astype(jnp.bfloat16)
    Ho, Wo = x_s.shape[1], x_s.shape[2]

    # Fold BN scales into the conv weights, put them in matmul (Cin, Cout) layout, bf16.
    w1f, b1 = _fold_bn(params['conv1_w'], params['bn1'])
    w2f, b2 = _fold_bn(params['conv2_w'], params['bn2'])
    w3f, b3 = _fold_bn(params['conv3_w'], params['bn3'])
    w1 = jnp.transpose(w1f[:, :, 0, 0], (1, 0)).astype(jnp.bfloat16)            # (Cin, Cmid)
    w2 = jnp.transpose(w2f, (2, 3, 1, 0)).reshape(9, Cmid, Cmid).astype(jnp.bfloat16)
    w3 = jnp.transpose(w3f[:, :, 0, 0], (1, 0)).astype(jnp.bfloat16)            # (Cmid, Cout)

    args = [x_s, w1, w2, w3, b1, b2, b3]
    if has_downsample:
        w4f, b4 = _fold_bn(params['conv4_w'], params['bn4'])
        w4 = jnp.transpose(w4f[:, :, 0, 0], (1, 0)).astype(jnp.bfloat16)        # (Cin, Cout)
        args += [w4, b4]

    Nb = _pick_nb(N, Ho, Wo, Cin, Cmid, Cout)

    def _full_spec(a):
        nd = a.ndim
        return pl.BlockSpec(a.shape, lambda b, _nd=nd: (0,) * _nd)

    in_specs = [pl.BlockSpec((Nb, Ho, Wo, Cin), lambda b: (b, 0, 0, 0))]
    in_specs += [_full_spec(a) for a in args[1:]]
    out_spec = pl.BlockSpec((Nb, Ho, Wo, Cout), lambda b: (b, 0, 0, 0))

    flops = 2 * N * Ho * Wo * (Cin * Cmid + 9 * Cmid * Cmid + Cmid * Cout
                               + (Cin * Cout if has_downsample else 0))
    bytes_accessed = int(sum(int(a.size) * a.dtype.itemsize for a in args)
                         + N * Ho * Wo * Cout * 4)

    kern = functools.partial(_bottleneck_kernel, has_downsample=has_downsample)
    out_nhwc = pl.pallas_call(
        kern,
        out_shape=jax.ShapeDtypeStruct((N, Ho, Wo, Cout), jnp.float32),
        grid_spec=pltpu.PrefetchScalarGridSpec(
            num_scalar_prefetch=0,
            grid=(N // Nb,),
            in_specs=in_specs,
            out_specs=out_spec,
            scratch_shapes=[pltpu.VMEM((3 * Nb, Ho + 2, Wo, Cmid), jnp.float32)],
        ),
        compiler_params=pltpu.CompilerParams(
            dimension_semantics=("parallel",),       # v7x: shard batch steps over both TCs
            vmem_limit_bytes=48 * 1024 * 1024,       # > 32 MiB default, < v7x 64 MiB physical
        ),
        cost_estimate=pl.CostEstimate(flops=flops, transcendentals=0,
                                      bytes_accessed=bytes_accessed),
    )(*args)

    return jnp.transpose(out_nhwc, (0, 3, 1, 2))     # back to NCHW


# ------------------------- parameter init (deterministic) -------------------------
def init_params(key, cin, cmid, cout, has_downsample):
    def kaiming_uniform(k, shape):      # nn.init.kaiming_uniform_(w, a=1), fan_in mode
        fan_in = shape[1] * shape[2] * shape[3]
        bound = float(np.sqrt(3.0 / fan_in))   # gain = sqrt(2/(1+a^2)) = 1 for a=1
        return jax.random.uniform(k, shape, jnp.float32, -bound, bound)

    def frozen_bn(k, n):                # non-trivial frozen stats (exercise BN folding)
        kw, kb, km, kv = jax.random.split(k, 4)
        return (jax.random.uniform(kw, (n,), jnp.float32, 0.5, 1.5),
                0.1 * jax.random.normal(kb, (n,), jnp.float32),
                0.1 * jax.random.normal(km, (n,), jnp.float32),
                jax.random.uniform(kv, (n,), jnp.float32, 0.5, 1.5))

    keys = jax.random.split(key, 8)
    p = {
        'conv1_w': kaiming_uniform(keys[0], (cmid, cin, 1, 1)),
        'conv2_w': kaiming_uniform(keys[1], (cmid, cmid, 3, 3)),
        'conv3_w': kaiming_uniform(keys[2], (cout, cmid, 1, 1)),
        'bn1': frozen_bn(keys[3], cmid),
        'bn2': frozen_bn(keys[4], cmid),
        'bn3': frozen_bn(keys[5], cout),
    }
    if has_downsample:
        p['conv4_w'] = kaiming_uniform(keys[6], (cout, cin, 1, 1))
        p['bn4'] = frozen_bn(keys[7], cout)
    return p


# ------------------------- pure-JAX f32 reference for verification -------------------------
def ref_forward(x, p, stride, has_downsample):
    dn = ('NCHW', 'OIHW', 'NCHW')

    def conv(a, w, s, pad):
        return jax.lax.conv_general_dilated(a, w, (s, s), pad, dimension_numbers=dn)

    def bn(a, bn_params):
        w, b, m, v = bn_params
        scale = w * jax.lax.rsqrt(v)
        bias = b - m * scale
        return a * scale.reshape(1, -1, 1, 1) + bias.reshape(1, -1, 1, 1)

    out = jax.nn.relu(bn(conv(x, p['conv1_w'], stride, 'VALID'), p['bn1']))
    out = jax.nn.relu(bn(conv(out, p['conv2_w'], 1, [(1, 1), (1, 1)]), p['bn2']))
    out = bn(conv(out, p['conv3_w'], 1, 'VALID'), p['bn3'])
    ident = bn(conv(x, p['conv4_w'], stride, 'VALID'), p['bn4']) if has_downsample else x
    return jax.nn.relu(out + ident)


if __name__ == "__main__":
    master_key = jax.random.PRNGKey(0)

    configs = [
        # (name, N, Cin, Cmid, Cout, H, W, stride)  -- Cout kept lane-dense (128)
        ("downsample", 2, 64, 32, 128, 16, 16, 2),   # stride!=1 / Cin!=Cout -> downsample
        ("identity",   2, 128, 32, 128, 16, 16, 1),  # plain residual identity
    ]

    for name, N, Cin, Cmid, Cout, H, W, stride in configs:
        has_ds = (stride != 1) or (Cin != Cout)
        kp, kx, master_key = jax.random.split(master_key, 3)
        params = init_params(kp, Cin, Cmid, Cout, has_ds)
        x = jax.random.normal(kx, (N, Cin, H, W), jnp.float32)

        out = jax.block_until_ready(spatial_bottleneck(x, params, stride, has_ds))
        ref = jax.block_until_ready(ref_forward(x, params, stride, has_ds))

        # Matmul operands are bf16 on the MXU (accumulation in f32), so compare
        # against the f32 reference at bf16-level tolerance.
        np.testing.assert_allclose(np.asarray(out), np.asarray(ref),
                                   rtol=5e-2, atol=5e-2)

    print("KERNEL_OK")
</pallas_src>

<mosaic_0001>
module attributes {stable_mosaic.version = 11 : i64} {
  func.func @_bottleneck_kernel(%arg0: i32, %arg1: memref<2x8x8x64xbf16, #tpu.memory_space<vmem>>, %arg2: memref<64x32xbf16, #tpu.memory_space<vmem>>, %arg3: memref<9x32x32xbf16, #tpu.memory_space<vmem>>, %arg4: memref<32x128xbf16, #tpu.memory_space<vmem>>, %arg5: memref<1x32xf32, #tpu.memory_space<vmem>>, %arg6: memref<1x32xf32, #tpu.memory_space<vmem>>, %arg7: memref<1x128xf32, #tpu.memory_space<vmem>>, %arg8: memref<64x128xbf16, #tpu.memory_space<vmem>>, %arg9: memref<1x128xf32, #tpu.memory_space<vmem>>, %arg10: memref<2x8x8x128xf32, #tpu.memory_space<vmem>>, %arg11: memref<6x10x8x32xf32, #tpu.memory_space<vmem>>) attributes {dimension_semantics = [#tpu.dimension_semantics<parallel>], iteration_bounds = array<i64: 1>, scalar_prefetch = 0 : i64, scratch_operands = 1 : i64, tpu.core_type = #tpu.core_type<tc>, window_params = [{transform_indices = @transform_0, window_bounds = array<i64: 2, 8, 8, 64>}, {pipeline_mode = #tpu.pipeline_mode<synchronous>, transform_indices = @transform_1, window_bounds = array<i64: 64, 32>}, {pipeline_mode = #tpu.pipeline_mode<synchronous>, transform_indices = @transform_2, window_bounds = array<i64: 9, 32, 32>}, {pipeline_mode = #tpu.pipeline_mode<synchronous>, transform_indices = @transform_3, window_bounds = array<i64: 32, 128>}, {pipeline_mode = #tpu.pipeline_mode<synchronous>, transform_indices = @transform_4, window_bounds = array<i64: 1, 32>}, {pipeline_mode = #tpu.pipeline_mode<synchronous>, transform_indices = @transform_5, window_bounds = array<i64: 1, 32>}, {pipeline_mode = #tpu.pipeline_mode<synchronous>, transform_indices = @transform_6, window_bounds = array<i64: 1, 128>}, {pipeline_mode = #tpu.pipeline_mode<synchronous>, transform_indices = @transform_7, window_bounds = array<i64: 64, 128>}, {pipeline_mode = #tpu.pipeline_mode<synchronous>, transform_indices = @transform_8, window_bounds = array<i64: 1, 128>}, {transform_indices = @transform_9, window_bounds = array<i64: 2, 8, 8, 128>}]} {
    %c0 = arith.constant 0 : index
    %c0_0 = arith.constant 0 : index
    %c0_1 = arith.constant 0 : index
    %c0_2 = arith.constant 0 : index
    %0 = vector.load %arg1[%c0, %c0_0, %c0_1, %c0_2] : memref<2x8x8x64xbf16, #tpu.memory_space<vmem>>, vector<2x8x8x64xbf16>
    %1 = vector.shape_cast %0 : vector<2x8x8x64xbf16> to vector<128x64xbf16>
    %c0_3 = arith.constant 0 : index
    %c0_4 = arith.constant 0 : index
    %2 = vector.load %arg2[%c0_3, %c0_4] : memref<64x32xbf16, #tpu.memory_space<vmem>>, vector<64x32xbf16>
    %cst = arith.constant dense<0.000000e+00> : vector<128x32xf32>
    %3 = tpu.matmul %1, %2, %cst {dimension_numbers = #tpu.dot_dimension_numbers<[1], [0], [0], [1], [0, 0, 1, 1], [], []>} : vector<128x64xbf16>, vector<64x32xbf16>, vector<128x32xf32> -> vector<128x32xf32>
    %c0_5 = arith.constant 0 : index
    %c0_6 = arith.constant 0 : index
    %4 = vector.load %arg5[%c0_5, %c0_6] : memref<1x32xf32, #tpu.memory_space<vmem>>, vector<1x32xf32>
    %5 = vector.broadcast %4 : vector<1x32xf32> to vector<128x32xf32>
    %6 = arith.addf %3, %5 : vector<128x32xf32>
    %cst_7 = arith.constant 0.000000e+00 : f32
    %7 = vector.broadcast %cst_7 : f32 to vector<128x32xf32>
    %8 = arith.maximumf %6, %7 : vector<128x32xf32>
    %9 = vector.shape_cast %8 : vector<128x32xf32> to vector<2x8x8x32xf32>
    %cst_8 = arith.constant 0.000000e+00 : f32
    %10 = vector.broadcast %cst_8 : f32 to vector<6x1x8x32xf32>
    %c0_9 = arith.constant 0 : index
    %c0_10 = arith.constant 0 : index
    %c0_11 = arith.constant 0 : index
    %c0_12 = arith.constant 0 : index
    %11 = vector.load %arg11[%c0_9, %c0_10, %c0_11, %c0_12] : memref<6x10x8x32xf32, #tpu.memory_space<vmem>>, vector<6x1x8x32xf32>
    tpu.vector_store %arg11[%c0_9, %c0_10, %c0_11, %c0_12], %10 {strides = array<i32>} : memref<6x10x8x32xf32, #tpu.memory_space<vmem>>, vector<6x1x8x32xf32>,
    %c0_13 = arith.constant 0 : index
    %c9 = arith.constant 9 : index
    %c0_14 = arith.constant 0 : index
    %c0_15 = arith.constant 0 : index
    %12 = vector.load %arg11[%c0_13, %c9, %c0_14, %c0_15] : memref<6x10x8x32xf32, #tpu.memory_space<vmem>>, vector<6x1x8x32xf32>
    tpu.vector_store %arg11[%c0_13, %c9, %c0_14, %c0_15], %10 {strides = array<i32>} : memref<6x10x8x32xf32, #tpu.memory_space<vmem>>, vector<6x1x8x32xf32>,
    %cst_16 = arith.constant 0.000000e+00 : f32
    %13 = vector.broadcast %cst_16 : f32 to vector<2x10x1x32xf32>
    %c0_17 = arith.constant 0 : index
    %c0_18 = arith.constant 0 : index
    %c0_19 = arith.constant 0 : index
    %c0_20 = arith.constant 0 : index
    %14 = vector.load %arg11[%c0_17, %c0_18, %c0_19, %c0_20] : memref<6x10x8x32xf32, #tpu.memory_space<vmem>>, vector<2x10x1x32xf32>
    tpu.vector_store %arg11[%c0_17, %c0_18, %c0_19, %c0_20], %13 {strides = array<i32>} : memref<6x10x8x32xf32, #tpu.memory_space<vmem>>, vector<2x10x1x32xf32>,
    %c4 = arith.constant 4 : index
    %c0_21 = arith.constant 0 : index
    %c7 = arith.constant 7 : index
    %c0_22 = arith.constant 0 : index
    %15 = vector.load %arg11[%c4, %c0_21, %c7, %c0_22] : memref<6x10x8x32xf32, #tpu.memory_space<vmem>>, vector<2x10x1x32xf32>
    tpu.vector_store %arg11[%c4, %c0_21, %c7, %c0_22], %13 {strides = array<i32>} : memref<6x10x8x32xf32, #tpu.memory_space<vmem>>, vector<2x10x1x32xf32>,
    %16 = vector.extract_strided_slice %9 {offsets = [0, 0, 0, 0], sizes = [2, 8, 7, 32], strides = [1, 1, 1, 1]} : vector<2x8x8x32xf32> to vector<2x8x7x32xf32>
    %c0_23 = arith.constant 0 : index
    %c1 = arith.constant 1 : index
    %c1_24 = arith.constant 1 : index
    %c0_25 = arith.constant 0 : index
    %17 = vector.load %arg11[%c0_23, %c1, %c1_24, %c0_25] : memref<6x10x8x32xf32, #tpu.memory_space<vmem>>, vector<2x8x7x32xf32>
    tpu.vector_store %arg11[%c0_23, %c1, %c1_24, %c0_25], %16 {strides = array<i32>} : memref<6x10x8x32xf32, #tpu.memory_space<vmem>>, vector<2x8x7x32xf32>,
    %c2 = arith.constant 2 : index
    %c1_26 = arith.constant 1 : index
    %c0_27 = arith.constant 0 : index
    %c0_28 = arith.constant 0 : index
    %18 = vector.load %arg11[%c2, %c1_26, %c0_27, %c0_28] : memref<6x10x8x32xf32, #tpu.memory_space<vmem>>, vector<2x8x8x32xf32>
    tpu.vector_store %arg11[%c2, %c1_26, %c0_27, %c0_28], %9 {strides = array<i32>} : memref<6x10x8x32xf32, #tpu.memory_space<vmem>>, vector<2x8x8x32xf32>,
    %19 = vector.extract_strided_slice %9 {offsets = [0, 0, 1, 0], sizes = [2, 8, 7, 32], strides = [1, 1, 1, 1]} : vector<2x8x8x32xf32> to vector<2x8x7x32xf32>
    %c4_29 = arith.constant 4 : index
    %c1_30 = arith.constant 1 : index
    %c0_31 = arith.constant 0 : index
    %c0_32 = arith.constant 0 : index
    %20 = vector.load %arg11[%c4_29, %c1_30, %c0_31, %c0_32] : memref<6x10x8x32xf32, #tpu.memory_space<vmem>>, vector<2x8x7x32xf32>
    tpu.vector_store %arg11[%c4_29, %c1_30, %c0_31, %c0_32], %19 {strides = array<i32>} : memref<6x10x8x32xf32, #tpu.memory_space<vmem>>, vector<2x8x7x32xf32>,
    %cst_33 = arith.constant 0.000000e+00 : f32
    %21 = vector.broadcast %cst_33 : f32 to vector<128x32xf32>
    %c0_34 = arith.constant 0 : index
    %c0_35 = arith.constant 0 : index
    %c0_36 = arith.constant 0 : index
    %c0_37 = arith.constant 0 : index
    %22 = vector.load %arg11[%c0_34, %c0_35, %c0_36, %c0_37] : memref<6x10x8x32xf32, #tpu.memory_space<vmem>>, vector<2x8x8x32xf32>
    %23 = vector.shape_cast %22 : vector<2x8x8x32xf32> to vector<128x32xf32>
    %24 = arith.truncf %23 : vector<128x32xf32> to vector<128x32xbf16>
    %c0_38 = arith.constant 0 : index
    %c0_39 = arith.constant 0 : index
    %c0_40 = arith.constant 0 : index
    %25 = vector.load %arg3[%c0_38, %c0_39, %c0_40] : memref<9x32x32xbf16, #tpu.memory_space<vmem>>, vector<1x32x32xbf16>
    %26 = vector.shape_cast %25 : vector<1x32x32xbf16> to vector<32x32xbf16>
    %cst_41 = arith.constant dense<0.000000e+00> : vector<128x32xf32>
    %27 = tpu.matmul %24, %26, %cst_41 {dimension_numbers = #tpu.dot_dimension_numbers<[1], [0], [0], [1], [0, 0, 1, 1], [], []>} : vector<128x32xbf16>, vector<32x32xbf16>, vector<128x32xf32> -> vector<128x32xf32>
    %28 = arith.addf %21, %27 : vector<128x32xf32>
    %c2_42 = arith.constant 2 : index
    %c0_43 = arith.constant 0 : index
    %c0_44 = arith.constant 0 : index
    %c0_45 = arith.constant 0 : index
    %29 = vector.load %arg11[%c2_42, %c0_43, %c0_44, %c0_45] : memref<6x10x8x32xf32, #tpu.memory_space<vmem>>, vector<2x8x8x32xf32>
    %30 = vector.shape_cast %29 : vector<2x8x8x32xf32> to vector<128x32xf32>
    %31 = arith.truncf %30 : vector<128x32xf32> to vector<128x32xbf16>
    %c1_46 = arith.constant 1 : index
    %c0_47 = arith.constant 0 : index
    %c0_48 = arith.constant 0 : index
    %32 = vector.load %arg3[%c1_46, %c0_47, %c0_48] : memref<9x32x32xbf16, #tpu.memory_space<vmem>>, vector<1x32x32xbf16>
    %33 = vector.shape_cast %32 : vector<1x32x32xbf16> to vector<32x32xbf16>
    %cst_49 = arith.constant dense<0.000000e+00> : vector<128x32xf32>
    %34 = tpu.matmul %31, %33, %cst_49 {dimension_numbers = #tpu.dot_dimension_numbers<[1], [0], [0], [1], [0, 0, 1, 1], [], []>} : vector<128x32xbf16>, vector<32x32xbf16>, vector<128x32xf32> -> vector<128x32xf32>
    %35 = arith.addf %28, %34 : vector<128x32xf32>
    %c4_50 = arith.constant 4 : index
    %c0_51 = arith.constant 0 : index
    %c0_52 = arith.constant 0 : index
    %c0_53 = arith.constant 0 : index
    %36 = vector.load %arg11[%c4_50, %c0_51, %c0_52, %c0_53] : memref<6x10x8x32xf32, #tpu.memory_space<vmem>>, vector<2x8x8x32xf32>
    %37 = vector.shape_cast %36 : vector<2x8x8x32xf32> to vector<128x32xf32>
    %38 = arith.truncf %37 : vector<128x32xf32> to vector<128x32xbf16>
    %c2_54 = arith.constant 2 : index
    %c0_55 = arith.constant 0 : index
    %c0_56 = arith.constant 0 : index
    %39 = vector.load %arg3[%c2_54, %c0_55, %c0_56] : memref<9x32x32xbf16, #tpu.memory_space<vmem>>, vector<1x32x32xbf16>
    %40 = vector.shape_cast %39 : vector<1x32x32xbf16> to vector<32x32xbf16>
    %cst_57 = arith.constant dense<0.000000e+00> : vector<128x32xf32>
    %41 = tpu.matmul %38, %40, %cst_57 {dimension_numbers = #tpu.dot_dimension_numbers<[1], [0], [0], [1], [0, 0, 1, 1], [], []>} : vector<128x32xbf16>, vector<32x32xbf16>, vector<128x32xf32> -> vector<128x32xf32>
    %42 = arith.addf %35, %41 : vector<128x32xf32>
    %c0_58 = arith.constant 0 : index
    %c1_59 = arith.constant 1 : index
    %c0_60 = arith.constant 0 : index
    %c0_61 = arith.constant 0 : index
    %43 = vector.load %arg11[%c0_58, %c1_59, %c0_60, %c0_61] : memref<6x10x8x32xf32, #tpu.memory_space<vmem>>, vector<2x8x8x32xf32>
    %44 = vector.shape_cast %43 : vector<2x8x8x32xf32> to vector<128x32xf32>
    %45 = arith.truncf %44 : vector<128x32xf32> to vector<128x32xbf16>
    %c3 = arith.constant 3 : index
    %c0_62 = arith.constant 0 : index
    %c0_63 = arith.constant 0 : index
    %46 = vector.load %arg3[%c3, %c0_62, %c0_63] : memref<9x32x32xbf16, #tpu.memory_space<vmem>>, vector<1x32x32xbf16>
    %47 = vector.shape_cast %46 : vector<1x32x32xbf16> to vector<32x32xbf16>
    %cst_64 = arith.constant dense<0.000000e+00> : vector<128x32xf32>
    %48 = tpu.matmul %45, %47, %cst_64 {dimension_numbers = #tpu.dot_dimension_numbers<[1], [0], [0], [1], [0, 0, 1, 1], [], []>} : vector<128x32xbf16>, vector<32x32xbf16>, vector<128x32xf32> -> vector<128x32xf32>
    %49 = arith.addf %42, %48 : vector<128x32xf32>
    %c2_65 = arith.constant 2 : index
    %c1_66 = arith.constant 1 : index
    %c0_67 = arith.constant 0 : index
    %c0_68 = arith.constant 0 : index
    %50 = vector.load %arg11[%c2_65, %c1_66, %c0_67, %c0_68] : memref<6x10x8x32xf32, #tpu.memory_space<vmem>>, vector<2x8x8x32xf32>
    %51 = vector.shape_cast %50 : vector<2x8x8x32xf32> to vector<128x32xf32>
    %52 = arith.truncf %51 : vector<128x32xf32> to vector<128x32xbf16>
    %c4_69 = arith.constant 4 : index
    %c0_70 = arith.constant 0 : index
    %c0_71 = arith.constant 0 : index
    %53 = vector.load %arg3[%c4_69, %c0_70, %c0_71] : memref<9x32x32xbf16, #tpu.memory_space<vmem>>, vector<1x32x32xbf16>
    %54 = vector.shape_cast %53 : vector<1x32x32xbf16> to vector<32x32xbf16>
    %cst_72 = arith.constant dense<0.000000e+00> : vector<128x32xf32>
    %55 = tpu.matmul %52, %54, %cst_72 {dimension_numbers = #tpu.dot_dimension_numbers<[1], [0], [0], [1], [0, 0, 1, 1], [], []>} : vector<128x32xbf16>, vector<32x32xbf16>, vector<128x32xf32> -> vector<128x32xf32>
    %56 = arith.addf %49, %55 : vector<128x32xf32>
    %c4_73 = arith.constant 4 : index
    %c1_74 = arith.constant 1 : index
    %c0_75 = arith.constant 0 : index
    %c0_76 = arith.constant 0 : index
    %57 = vector.load %arg11[%c4_73, %c1_74, %c0_75, %c0_76] : memref<6x10x8x32xf32, #tpu.memory_space<vmem>>, vector<2x8x8x32xf32>
    %58 = vector.shape_cast %57 : vector<2x8x8x32xf32> to vector<128x32xf32>
    %59 = arith.truncf %58 : vector<128x32xf32> to vector<128x32xbf16>
    %c5 = arith.constant 5 : index
    %c0_77 = arith.constant 0 : index
    %c0_78 = arith.constant 0 : index
    %60 = vector.load %arg3[%c5, %c0_77, %c0_78] : memref<9x32x32xbf16, #tpu.memory_space<vmem>>, vector<1x32x32xbf16>
    %61 = vector.shape_cast %60 : vector<1x32x32xbf16> to vector<32x32xbf16>
    %cst_79 = arith.constant dense<0.000000e+00> : vector<128x32xf32>
    %62 = tpu.matmul %59, %61, %cst_79 {dimension_numbers = #tpu.dot_dimension_numbers<[1], [0], [0], [1], [0, 0, 1, 1], [], []>} : vector<128x32xbf16>, vector<32x32xbf16>, vector<128x32xf32> -> vector<128x32xf32>
    %63 = arith.addf %56, %62 : vector<128x32xf32>
    %c0_80 = arith.constant 0 : index
    %c2_81 = arith.constant 2 : index
    %c0_82 = arith.constant 0 : index
    %c0_83 = arith.constant 0 : index
    %64 = vector.load %arg11[%c0_80, %c2_81, %c0_82, %c0_83] : memref<6x10x8x32xf32, #tpu.memory_space<vmem>>, vector<2x8x8x32xf32>
    %65 = vector.shape_cast %64 : vector<2x8x8x32xf32> to vector<128x32xf32>
    %66 = arith.truncf %65 : vector<128x32xf32> to vector<128x32xbf16>
    %c6 = arith.constant 6 : index
    %c0_84 = arith.constant 0 : index
    %c0_85 = arith.constant 0 : index
    %67 = vector.load %arg3[%c6, %c0_84, %c0_85] : memref<9x32x32xbf16, #tpu.memory_space<vmem>>, vector<1x32x32xbf16>
    %68 = vector.shape_cast %67 : vector<1x32x32xbf16> to vector<32x32xbf16>
    %cst_86 = arith.constant dense<0.000000e+00> : vector<128x32xf32>
    %69 = tpu.matmul %66, %68, %cst_86 {dimension_numbers = #tpu.dot_dimension_numbers<[1], [0], [0], [1], [0, 0, 1, 1], [], []>} : vector<128x32xbf16>, vector<32x32xbf16>, vector<128x32xf32> -> vector<128x32xf32>
    %70 = arith.addf %63, %69 : vector<128x32xf32>
    %c2_87 = arith.constant 2 : index
    %c2_88 = arith.constant 2 : index
    %c0_89 = arith.constant 0 : index
    %c0_90 = arith.constant 0 : index
    %71 = vector.load %arg11[%c2_87, %c2_88, %c0_89, %c0_90] : memref<6x10x8x32xf32, #tpu.memory_space<vmem>>, vector<2x8x8x32xf32>
    %72 = vector.shape_cast %71 : vector<2x8x8x32xf32> to vector<128x32xf32>
    %73 = arith.truncf %72 : vector<128x32xf32> to vector<128x32xbf16>
    %c7_91 = arith.constant 7 : index
    %c0_92 = arith.constant 0 : index
    %c0_93 = arith.constant 0 : index
    %74 = vector.load %arg3[%c7_91, %c0_92, %c0_93] : memref<9x32x32xbf16, #tpu.memory_space<vmem>>, vector<1x32x32xbf16>
    %75 = vector.shape_cast %74 : vector<1x32x32xbf16> to vector<32x32xbf16>
    %cst_94 = arith.constant dense<0.000000e+00> : vector<128x32xf32>
    %76 = tpu.matmul %73, %75, %cst_94 {dimension_numbers = #tpu.dot_dimension_numbers<[1], [0], [0], [1], [0, 0, 1, 1], [], []>} : vector<128x32xbf16>, vector<32x32xbf16>, vector<128x32xf32> -> vector<128x32xf32>
    %77 = arith.addf %70, %76 : vector<128x32xf32>
    %c4_95 = arith.constant 4 : index
    %c2_96 = arith.constant 2 : index
    %c0_97 = arith.constant 0 : index
    %c0_98 = arith.constant 0 : index
    %78 = vector.load %arg11[%c4_95, %c2_96, %c0_97, %c0_98] : memref<6x10x8x32xf32, #tpu.memory_space<vmem>>, vector<2x8x8x32xf32>
    %79 = vector.shape_cast %78 : vector<2x8x8x32xf32> to vector<128x32xf32>
    %80 = arith.truncf %79 : vector<128x32xf32> to vector<128x32xbf16>
    %c8 = arith.constant 8 : index
    %c0_99 = arith.constant 0 : index
    %c0_100 = arith.constant 0 : index
    %81 = vector.load %arg3[%c8, %c0_99, %c0_100] : memref<9x32x32xbf16, #tpu.memory_space<vmem>>, vector<1x32x32xbf16>
    %82 = vector.shape_cast %81 : vector<1x32x32xbf16> to vector<32x32xbf16>
    %cst_101 = arith.constant dense<0.000000e+00> : vector<128x32xf32>
    %83 = tpu.matmul %80, %82, %cst_101 {dimension_numbers = #tpu.dot_dimension_numbers<[1], [0], [0], [1], [0, 0, 1, 1], [], []>} : vector<128x32xbf16>, vector<32x32xbf16>, vector<128x32xf32> -> vector<128x32xf32>
    %84 = arith.addf %77, %83 : vector<128x32xf32>
    %c0_102 = arith.constant 0 : index
    %c0_103 = arith.constant 0 : index
    %85 = vector.load %arg6[%c0_102, %c0_103] : memref<1x32xf32, #tpu.memory_space<vmem>>, vector<1x32xf32>
    %86 = vector.broadcast %85 : vector<1x32xf32> to vector<128x32xf32>
    %87 = arith.addf %84, %86 : vector<128x32xf32>
    %cst_104 = arith.constant 0.000000e+00 : f32
    %88 = vector.broadcast %cst_104 : f32 to vector<128x32xf32>
    %89 = arith.maximumf %87, %88 : vector<128x32xf32>
    %90 = arith.truncf %89 : vector<128x32xf32> to vector<128x32xbf16>
    %c0_105 = arith.constant 0 : index
    %c0_106 = arith.constant 0 : index
    %91 = vector.load %arg4[%c0_105, %c0_106] : memref<32x128xbf16, #tpu.memory_space<vmem>>, vector<32x128xbf16>
    %cst_107 = arith.constant dense<0.000000e+00> : vector<128x128xf32>
    %92 = tpu.matmul %90, %91, %cst_107 {dimension_numbers = #tpu.dot_dimension_numbers<[1], [0], [0], [1], [0, 0, 1, 1], [], []>} : vector<128x32xbf16>, vector<32x128xbf16>, vector<128x128xf32> -> vector<128x128xf32>
    %c0_108 = arith.constant 0 : index
    %c0_109 = arith.constant 0 : index
    %93 = vector.load %arg7[%c0_108, %c0_109] : memref<1x128xf32, #tpu.memory_space<vmem>>, vector<1x128xf32>
    %94 = vector.broadcast %93 : vector<1x128xf32> to vector<128x128xf32>
    %95 = arith.addf %92, %94 : vector<128x128xf32>
    %c0_110 = arith.constant 0 : index
    %c0_111 = arith.constant 0 : index
    %96 = vector.load %arg8[%c0_110, %c0_111] : memref<64x128xbf16, #tpu.memory_space<vmem>>, vector<64x128xbf16>
    %cst_112 = arith.constant dense<0.000000e+00> : vector<128x128xf32>
    %97 = tpu.matmul %1, %96, %cst_112 {dimension_numbers = #tpu.dot_dimension_numbers<[1], [0], [0], [1], [0, 0, 1, 1], [], []>} : vector<128x64xbf16>, vector<64x128xbf16>, vector<128x128xf32> -> vector<128x128xf32>
    %c0_113 = arith.constant 0 : index
    %c0_114 = arith.constant 0 : index
    %98 = vector.load %arg9[%c0_113, %c0_114] : memref<1x128xf32, #tpu.memory_space<vmem>>, vector<1x128xf32>
    %99 = vector.broadcast %98 : vector<1x128xf32> to vector<128x128xf32>
    %100 = arith.addf %97, %99 : vector<128x128xf32>
    %101 = arith.addf %95, %100 : vector<128x128xf32>
    %cst_115 = arith.constant 0.000000e+00 : f32
    %102 = vector.broadcast %cst_115 : f32 to vector<128x128xf32>
    %103 = arith.maximumf %101, %102 : vector<128x128xf32>
    %104 = vector.shape_cast %103 : vector<128x128xf32> to vector<2x8x8x128xf32>
    %c0_116 = arith.constant 0 : index
    %c0_117 = arith.constant 0 : index
    %c0_118 = arith.constant 0 : index
    %c0_119 = arith.constant 0 : index
    %105 = vector.load %arg10[%c0_116, %c0_117, %c0_118, %c0_119] : memref<2x8x8x128xf32, #tpu.memory_space<vmem>>, vector<2x8x8x128xf32>
    tpu.vector_store %arg10[%c0_116, %c0_117, %c0_118, %c0_119], %104 {strides = array<i32>} : memref<2x8x8x128xf32, #tpu.memory_space<vmem>>, vector<2x8x8x128xf32>,
    return
  }
  func.func @transform_0(%arg0: i32) -> (i32, i32, i32, i32) {
    %c0_i32 = arith.constant 0 : i32
    %c0_i32_0 = arith.constant 0 : i32
    %c0_i32_1 = arith.constant 0 : i32
    %c0_i32_2 = arith.constant 0 : i32
    return %arg0, %c0_i32, %c0_i32_0, %c0_i32_1 : i32, i32, i32, i32
  }
  func.func @transform_1(%arg0: i32) -> (i32, i32) {
    %c0_i32 = arith.constant 0 : i32
    %c0_i32_0 = arith.constant 0 : i32
    %c0_i32_1 = arith.constant 0 : i32
    return %c0_i32, %c0_i32_0 : i32, i32
  }
  func.func @transform_2(%arg0: i32) -> (i32, i32, i32) {
    %c0_i32 = arith.constant 0 : i32
    %c0_i32_0 = arith.constant 0 : i32
    %c0_i32_1 = arith.constant 0 : i32
    %c0_i32_2 = arith.constant 0 : i32
    return %c0_i32, %c0_i32_0, %c0_i32_1 : i32, i32, i32
  }
  func.func @transform_3(%arg0: i32) -> (i32, i32) {
    %c0_i32 = arith.constant 0 : i32
    %c0_i32_0 = arith.constant 0 : i32
    %c0_i32_1 = arith.constant 0 : i32
    return %c0_i32, %c0_i32_0 : i32, i32
  }
  func.func @transform_4(%arg0: i32) -> (i32, i32) {
    %c0_i32 = arith.constant 0 : i32
    %c0_i32_0 = arith.constant 0 : i32
    %c0_i32_1 = arith.constant 0 : i32
    return %c0_i32, %c0_i32_0 : i32, i32
  }
  func.func @transform_5(%arg0: i32) -> (i32, i32) {
    %c0_i32 = arith.constant 0 : i32
    %c0_i32_0 = arith.constant 0 : i32
    %c0_i32_1 = arith.constant 0 : i32
    return %c0_i32, %c0_i32_0 : i32, i32
  }
  func.func @transform_6(%arg0: i32) -> (i32, i32) {
    %c0_i32 = arith.constant 0 : i32
    %c0_i32_0 = arith.constant 0 : i32
    %c0_i32_1 = arith.constant 0 : i32
    return %c0_i32, %c0_i32_0 : i32, i32
  }
  func.func @transform_7(%arg0: i32) -> (i32, i32) {
    %c0_i32 = arith.constant 0 : i32
    %c0_i32_0 = arith.constant 0 : i32
    %c0_i32_1 = arith.constant 0 : i32
    return %c0_i32, %c0_i32_0 : i32, i32
  }
  func.func @transform_8(%arg0: i32) -> (i32, i32) {
    %c0_i32 = arith.constant 0 : i32
    %c0_i32_0 = arith.constant 0 : i32
    %c0_i32_1 = arith.constant 0 : i32
    return %c0_i32, %c0_i32_0 : i32, i32
  }
  func.func @transform_9(%arg0: i32) -> (i32, i32, i32, i32) {
    %c0_i32 = arith.constant 0 : i32
    %c0_i32_0 = arith.constant 0 : i32
    %c0_i32_1 = arith.constant 0 : i32
    %c0_i32_2 = arith.constant 0 : i32
    return %arg0, %c0_i32, %c0_i32_0, %c0_i32_1 : i32, i32, i32, i32
  }
}

</mosaic_0001>

<llo_original>
// kernel: tpu_custom_call.1
$region0: #{tpu_custom_call.1}
  #allocation0 [shape = 'u32[]', space=smem, size = 0x4, offset = 0x4, fixed_abs, tag = 'smem constant byte address 0x4 - core index']
  #allocation1 [shape = 'u32[72,128]{1,0:T(1,128)}', space=vmem, size = 0x9000, scoped, tag = 'internal scratch']
  #allocation2 [shape = 'f32[6,10,8,32]{3,2,1,0:T(8,128)}', space=vmem, size = 0x3c000, scoped, tag = 'scratch operand']
  %s0 = inlined_call_operand.hbm [shape: bf16[2,8,8,64], index: 0, kind: input, shape index: {}]
  %s1 = inlined_call_operand.vmem [shape: bf16[64,32], index: 1, kind: input, shape index: {}]
  %s2 = inlined_call_operand.hbm [shape: bf16[9,32,32], index: 2, kind: input, shape index: {}]
  %s3 = inlined_call_operand.vmem [shape: bf16[32,128], index: 3, kind: input, shape index: {}]
  %s4 = inlined_call_operand.vmem [shape: f32[1,32], index: 4, kind: input, shape index: {}]
  %s5 = inlined_call_operand.vmem [shape: f32[1,32], index: 5, kind: input, shape index: {}]
  %s6 = inlined_call_operand.vmem [shape: f32[1,128], index: 6, kind: input, shape index: {}]
  %s7 = inlined_call_operand.vmem [shape: bf16[64,128], index: 7, kind: input, shape index: {}]
  %s8 = inlined_call_operand.vmem [shape: f32[1,128], index: 8, kind: input, shape index: {}]
  %s9 = inlined_call_operand.hbm [shape: f32[2,8,8,128], index: 9, kind: output, shape index: {}]
  %s10 = sld [smem:[#allocation0]]
  $region54: #{tpu_custom_call.1} parent=0
    _
  %s12 = ssub.s32 1, %s10
  %s13 = scalar_select 0, %s12, %s10
  $region1: #{tpu_custom_call.1} parent=0
    #allocation3 [shape = 'u8[32768]{0}', space=vmem, size = 0x8000, scoped, tag = 'input window, operand 0, single buffered']
    #allocation4 [shape = 's32[1]{0}', space=sflag, size = 0x4, scoped, tag = 'scoped memory for tpu_custom_call.1']
    #allocation5 [shape = 's32[1]{0}', space=sflag, size = 0x4, scoped, tag = 'scoped memory for tpu_custom_call.1']
    #allocation6 [shape = 'u8[73728]{0}', space=vmem, size = 0x12000, scoped, tag = 'input window, operand 2, single buffered']
    #allocation7 [shape = 's32[1]{0}', space=sflag, size = 0x4, scoped, tag = 'scoped memory for tpu_custom_call.1']
    #allocation8 [shape = 'u8[65536]{0}', space=vmem, size = 0x10000, scoped, tag = 'output window, operand 0, single buffered']
    %14 = vsyncpa [#allocation4], 0
    %15 = vsyncpa [#allocation7], 0
    %16 = vsyncpa [#allocation5], 0
    // Predicated region
    $region2: #{tpu_custom_call.1} parent=1 // pred_check
      _
    $region3: #{tpu_custom_call.1} parent=1 // pred_check_branch
      %18 = sbr.rel (0) target = $region5
    $region4: #{tpu_custom_call.1} parent=1 // pred_region
      %20 = vsyncadd [#allocation4], 0
      %s21 = sshll.u32 %s0, 4
      %s22 = int_to_ptr.hbm [resolvable:$true] %s21
      %s23 = sshll.u32 [#allocation3], 4
      %s24 = int_to_ptr.vmem [resolvable:$true] %s23
      %29 = dma.hbm_to_vmem [thread:$0]  %s22, 1024, %s24, [#allocation4], 64, 64, 4
    $region5: #{tpu_custom_call.1} parent=1 // pred_fallthru
      _
    // Predicated region
    $region6: #{tpu_custom_call.1} parent=1 // pred_check
      _
    $region7: #{tpu_custom_call.1} parent=1 // pred_check_branch
      %31 = sbr.rel (0) target = $region9
    $region8: #{tpu_custom_call.1} parent=1 // pred_region
      _
    $region9: #{tpu_custom_call.1} parent=1 // pred_fallthru
      _
    // Predicated region
    $region10: #{tpu_custom_call.1} parent=1 // pred_check
      _
    $region11: #{tpu_custom_call.1} parent=1 // pred_check_branch
      %33 = sbr.rel (0) target = $region13
    $region12: #{tpu_custom_call.1} parent=1 // pred_region
      %35 = vsyncadd [#allocation7], 0
      %s36 = sshll.u32 %s2, 4
      %s37 = int_to_ptr.hbm [resolvable:$true] %s36
      %s38 = sshll.u32 [#allocation6], 4
      %s39 = int_to_ptr.vmem [resolvable:$true] %s38
      %44 = dma.hbm_to_vmem [thread:$0]  %s37, 2304, %s39, [#allocation7], 64, 64, 4
    $region13: #{tpu_custom_call.1} parent=1 // pred_fallthru
      _
    // Predicated region
    $region14: #{tpu_custom_call.1} parent=1 // pred_check
      _
    $region15: #{tpu_custom_call.1} parent=1 // pred_check_branch
      %46 = sbr.rel (0) target = $region17
    $region16: #{tpu_custom_call.1} parent=1 // pred_region
      _
    $region17: #{tpu_custom_call.1} parent=1 // pred_fallthru
      _
    // Predicated region
    $region18: #{tpu_custom_call.1} parent=1 // pred_check
      _
    $region19: #{tpu_custom_call.1} parent=1 // pred_check_branch
      %48 = sbr.rel (0) target = $region21
    $region20: #{tpu_custom_call.1} parent=1 // pred_region
      _
    $region21: #{tpu_custom_call.1} parent=1 // pred_fallthru
      _
    // Predicated region
    $region22: #{tpu_custom_call.1} parent=1 // pred_check
      _
    $region23: #{tpu_custom_call.1} parent=1 // pred_check_branch
      %50 = sbr.rel (0) target = $region25
    $region24: #{tpu_custom_call.1} parent=1 // pred_region
      _
    $region25: #{tpu_custom_call.1} parent=1 // pred_fallthru
      _
    // Predicated region
    $region26: #{tpu_custom_call.1} parent=1 // pred_check
      _
    $region27: #{tpu_custom_call.1} parent=1 // pred_check_branch
      %52 = sbr.rel (0) target = $region29
    $region28: #{tpu_custom_call.1} parent=1 // pred_region
      _
    $region29: #{tpu_custom_call.1} parent=1 // pred_fallthru
      _
    // Predicated region
    $region30: #{tpu_custom_call.1} parent=1 // pred_check
      _
    $region31: #{tpu_custom_call.1} parent=1 // pred_check_branch
      %54 = sbr.rel (0) target = $region33
    $region32: #{tpu_custom_call.1} parent=1 // pred_region
      _
    $region33: #{tpu_custom_call.1} parent=1 // pred_fallthru
      _
    // Predicated region
    $region34: #{tpu_custom_call.1} parent=1 // pred_check
      _
    $region35: #{tpu_custom_call.1} parent=1 // pred_check_branch
      %56 = sbr.rel (0) target = $region37
    $region36: #{tpu_custom_call.1} parent=1 // pred_region
      _
    $region37: #{tpu_custom_call.1} parent=1 // pred_fallthru
      _
    // Predicated region
    $region38: #{tpu_custom_call.1} parent=1 // pred_check
      _
    $region39: #{tpu_custom_call.1} parent=1 // pred_check_branch
      %58 = sbr.rel (0) target = $region41
    $region40: #{tpu_custom_call.1} parent=1 // pred_region
      %60 = dma.done [#allocation4], 1024
    $region41: #{tpu_custom_call.1} parent=1 // pred_fallthru
      _
    // Predicated region
    $region42: #{tpu_custom_call.1} parent=1 // pred_check
      _
    $region43: #{tpu_custom_call.1} parent=1 // pred_check_branch
      %62 = sbr.rel (0) target = $region45
    $region44: #{tpu_custom_call.1} parent=1 // pred_region
      %64 = dma.done [#allocation7], 2304
    $region45: #{tpu_custom_call.1} parent=1 // pred_fallthru
      _
    %v66 = vld [vmem:[#allocation3] sm:$0xf]
    %v67 = vld [vmem:[#allocation3 + $0x4] sm:$0xf]
    %v68 = vld [vmem:[#allocation3 + $0x8] sm:$0xf]
    %v69 = vld [vmem:[#allocation3 + $0xc] sm:$0xf]
    %v70 = vld [vmem:[#allocation3 + $0x10] sm:$0xf]
    %v71 = vld [vmem:[#allocation3 + $0x14] sm:$0xf]
    %v72 = vld [vmem:[#allocation3 + $0x18] sm:$0xf]
    %v73 = vld [vmem:[#allocation3 + $0x1c] sm:$0xf]
    %v74 = vld [vmem:[#allocation3 + $0x20] sm:$0xf]
    %v75 = vld [vmem:[#allocation3 + $0x24] sm:$0xf]
    %v76 = vld [vmem:[#allocation3 + $0x28] sm:$0xf]
    %v77 = vld [vmem:[#allocation3 + $0x2c] sm:$0xf]
    %v78 = vld [vmem:[#allocation3 + $0x30] sm:$0xf]
    %v79 = vld [vmem:[#allocation3 + $0x34] sm:$0xf]
    %v80 = vld [vmem:[#allocation3 + $0x38] sm:$0xf]
    %v81 = vld [vmem:[#allocation3 + $0x3c] sm:$0xf]
    %v82 = vld [vmem:[%s1] sm:$0xf]
    %v83 = vld [vmem:[%s1 + $0x4] sm:$0xf]
    %v84 = vld [vmem:[%s1 + $0x8] sm:$0xf]
    %v85 = vld [vmem:[%s1 + $0xc] sm:$0xf]
    %v86 = vld [vmem:[%s1 + $0x10] sm:$0xf]
    %v87 = vld [vmem:[%s1 + $0x14] sm:$0xf]
    %v88 = vld [vmem:[%s1 + $0x18] sm:$0xf]
    %v89 = vld [vmem:[%s1 + $0x1c] sm:$0xf]
    %v90 = vld [vmem:[%s4] sm:$0x1]
    %v92 = vperm.slane %v90, 0
    %v110 = vunpack.c.l.b16 %v66
    %v111 = vunpack.c.l.b16 %v67
    %v112 = vunpack.c.l.b16 %v68
    %v113 = vunpack.c.l.b16 %v69
    %v114 = vunpack.c.l.b16 %v70
    %v115 = vunpack.c.l.b16 %v71
    %v116 = vunpack.c.l.b16 %v72
    %v117 = vunpack.c.l.b16 %v73
    %v118 = vunpack.c.l.b16 %v74
    %v119 = vunpack.c.l.b16 %v75
    %v120 = vunpack.c.l.b16 %v76
    %v121 = vunpack.c.l.b16 %v77
    %v122 = vunpack.c.l.b16 %v78
    %v123 = vunpack.c.l.b16 %v79
    %v124 = vunpack.c.l.b16 %v80
    %v125 = vunpack.c.l.b16 %v81
    %v126 = vpack.c.b16 %v111, %v110
    %v127 = vpack.c.b16 %v113, %v112
    %v128 = vpack.c.b16 %v115, %v114
    %v129 = vpack.c.b16 %v117, %v116
    %v130 = vpack.c.b16 %v119, %v118
    %v131 = vpack.c.b16 %v121, %v120
    %v132 = vpack.c.b16 %v123, %v122
    %v133 = vpack.c.b16 %v125, %v124
    %v142 = vunpack.c.l.b16 %v82
    %v143 = vunpack.c.l.b16 %v83
    %v144 = vunpack.c.l.b16 %v84
    %v145 = vunpack.c.l.b16 %v85
    %v146 = vunpack.c.l.b16 %v86
    %v147 = vunpack.c.l.b16 %v87
    %v148 = vunpack.c.l.b16 %v88
    %v149 = vunpack.c.l.b16 %v89
    %v150 = vpack.c.b16 %v143, %v142
    %v151 = vpack.c.b16 %v145, %v144
    %v152 = vpack.c.b16 %v147, %v146
    %v153 = vpack.c.b16 %v149, %v148
    %vm158 = vcmask 523264
    %v160 = vsel %vm158, %v126, 0
    %v163 = vsel %vm158, %v127, 0
    %v166 = vsel %vm158, %v128, 0
    %v169 = vsel %vm158, %v129, 0
    %v172 = vsel %vm158, %v130, 0
    %v175 = vsel %vm158, %v131, 0
    %v178 = vsel %vm158, %v132, 0
    %v181 = vsel %vm158, %v133, 0
    %183 = vmatpush.bf16.msra.mxu0 0
    %184 = vmatpush.bf16.msra.mxu0 0
    %185 = vmatpush.bf16.msra.mxu0 0
    %186 = vmatpush.bf16.msra.mxu0 0
    %187 = vmatpush.bf16.msra.mxu0 %v153
    %188 = vmatpush.bf16.msra.mxu0 %v152
    %189 = vmatpush.bf16.msra.mxu0 %v151
    %190 = vmatpush.bf16.msra.mxu0 %v150
    %191 = vmatmul.bf16.gmra.mxu0 %v160
    %v192 = vpop.f32.mrf.mxu0
    %v193 = vadd.f32 %v92, %v192
    %v194 = vpop.f32.mrf.mxu0
    %v195 = vadd.f32 %v92, %v194
    %196 = vmatmul.bf16.gmra.mxu0 %v163
    %v197 = vpop.f32.mrf.mxu0
    %v198 = vadd.f32 %v92, %v197
    %v199 = vpop.f32.mrf.mxu0
    %v200 = vadd.f32 %v92, %v199
    %201 = vmatmul.bf16.gmra.mxu0 %v166
    %v202 = vpop.f32.mrf.mxu0
    %v203 = vadd.f32 %v92, %v202
    %v204 = vpop.f32.mrf.mxu0
    %v205 = vadd.f32 %v92, %v204
    %206 = vmatmul.bf16.gmra.mxu0 %v169
    %v207 = vpop.f32.mrf.mxu0
    %v208 = vadd.f32 %v92, %v207
    %v209 = vpop.f32.mrf.mxu0
    %v210 = vadd.f32 %v92, %v209
    %211 = vmatmul.bf16.gmra.mxu0 %v172
    %v212 = vpop.f32.mrf.mxu0
    %v213 = vadd.f32 %v92, %v212
    %v214 = vpop.f32.mrf.mxu0
    %v215 = vadd.f32 %v92, %v214
    %216 = vmatmul.bf16.gmra.mxu0 %v175
    %v217 = vpop.f32.mrf.mxu0
    %v218 = vadd.f32 %v92, %v217
    %v219 = vpop.f32.mrf.mxu0
    %v220 = vadd.f32 %v92, %v219
    %221 = vmatmul.bf16.gmra.mxu0 %v178
    %v222 = vpop.f32.mrf.mxu0
    %v223 = vadd.f32 %v92, %v222
    %v224 = vpop.f32.mrf.mxu0
    %v225 = vadd.f32 %v92, %v224
    %226 = vmatmul.bf16.gmra.mxu0 %v181
    %v227 = vpop.f32.mrf.mxu0
    %v228 = vadd.f32 %v92, %v227
    %v229 = vpop.f32.mrf.mxu0
    %v230 = vadd.f32 %v92, %v229
    %231 = vdwg.mxu0
    %v232 = vmax.f32 %v193, 0.0
    %v233 = vmax.f32 %v195, 0.0
    %v234 = vmax.f32 %v198, 0.0
    %v235 = vmax.f32 %v200, 0.0
    %v236 = vmax.f32 %v203, 0.0
    %v237 = vmax.f32 %v205, 0.0
    %v238 = vmax.f32 %v208, 0.0
    %v239 = vmax.f32 %v210, 0.0
    %v240 = vmax.f32 %v213, 0.0
    %v241 = vmax.f32 %v215, 0.0
    %v242 = vmax.f32 %v218, 0.0
    %v243 = vmax.f32 %v220, 0.0
    %v244 = vmax.f32 %v223, 0.0
    %v245 = vmax.f32 %v225, 0.0
    %v246 = vmax.f32 %v228, 0.0
    %v247 = vmax.f32 %v230, 0.0
    %vm248 = vcmask 261120
    %249 = vst.msk [vmem:[#allocation2] sm:$0xff] %vm248, 0.0
    %250 = vst.msk [vmem:[#allocation2 + $0x50] sm:$0xff] %vm248, 0.0
    %251 = vst.msk [vmem:[#allocation2 + $0xa0] sm:$0xff] %vm248, 0.0
    %252 = vst.msk [vmem:[#allocation2 + $0xf0] sm:$0xff] %vm248, 0.0
    %253 = vst.msk [vmem:[#allocation2 + $0x140] sm:$0xff] %vm248, 0.0
    %254 = vst.msk [vmem:[#allocation2 + $0x190] sm:$0xff] %vm248, 0.0
    %s255 = scalar_lea.vmem [#allocation2], 72
    %256 = vst.msk [vmem:[%s255] sm:$0xff] %vm248, 0.0
    %257 = vst.msk [vmem:[%s255 + $0x50] sm:$0xff] %vm248, 0.0
    %258 = vst.msk [vmem:[%s255 + $0xa0] sm:$0xff] %vm248, 0.0
    %259 = vst.msk [vmem:[%s255 + $0xf0] sm:$0xff] %vm248, 0.0
    %260 = vst.msk [vmem:[%s255 + $0x140] sm:$0xff] %vm248, 0.0
    %261 = vst.msk [vmem:[%s255 + $0x190] sm:$0xff] %vm248, 0.0
    %vm262 = vcmask 253952
    %263 = vst.msk [vmem:[#allocation2] sm:$0x1] %vm262, 0.0
    %264 = vst.msk [vmem:[#allocation2 + $0x8] sm:$0x1] %vm262, 0.0
    %265 = vst.msk [vmem:[#allocation2 + $0x10] sm:$0x1] %vm262, 0.0
    %266 = vst.msk [vmem:[#allocation2 + $0x18] sm:$0x1] %vm262, 0.0
    %267 = vst.msk [vmem:[#allocation2 + $0x20] sm:$0x1] %vm262, 0.0
    %268 = vst.msk [vmem:[#allocation2 + $0x28] sm:$0x1] %vm262, 0.0
    %269 = vst.msk [vmem:[#allocation2 + $0x30] sm:$0x1] %vm262, 0.0
    %270 = vst.msk [vmem:[#allocation2 + $0x38] sm:$0x1] %vm262, 0.0
    %271 = vst.msk [vmem:[#allocation2 + $0x40] sm:$0x1] %vm262, 0.0
    %272 = vst.msk [vmem:[#allocation2 + $0x48] sm:$0x1] %vm262, 0.0
    %273 = vst.msk [vmem:[#allocation2 + $0x50] sm:$0x1] %vm262, 0.0
    %274 = vst.msk [vmem:[#allocation2 + $0x58] sm:$0x1] %vm262, 0.0
    %275 = vst.msk [vmem:[#allocation2 + $0x60] sm:$0x1] %vm262, 0.0
    %276 = vst.msk [vmem:[#allocation2 + $0x68] sm:$0x1] %vm262, 0.0
    %277 = vst.msk [vmem:[#allocation2 + $0x70] sm:$0x1] %vm262, 0.0
    %278 = vst.msk [vmem:[#allocation2 + $0x78] sm:$0x1] %vm262, 0.0
    %279 = vst.msk [vmem:[#allocation2 + $0x80] sm:$0x1] %vm262, 0.0
    %280 = vst.msk [vmem:[#allocation2 + $0x88] sm:$0x1] %vm262, 0.0
    %281 = vst.msk [vmem:[#allocation2 + $0x90] sm:$0x1] %vm262, 0.0
    %282 = vst.msk [vmem:[#allocation2 + $0x98] sm:$0x1] %vm262, 0.0
    %s283 = scalar_lea.vmem [#allocation2], 320
    %284 = vst.msk [vmem:[%s283 + $0x7] sm:$0x1] %vm262, 0.0
    %285 = vst.msk [vmem:[%s283 + $0xf] sm:$0x1] %vm262, 0.0
    %286 = vst.msk [vmem:[%s283 + $0x17] sm:$0x1] %vm262, 0.0
    %287 = vst.msk [vmem:[%s283 + $0x1f] sm:$0x1] %vm262, 0.0
    %288 = vst.msk [vmem:[%s283 + $0x27] sm:$0x1] %vm262, 0.0
    %289 = vst.msk [vmem:[%s283 + $0x2f] sm:$0x1] %vm262, 0.0
    %290 = vst.msk [vmem:[%s283 + $0x37] sm:$0x1] %vm262, 0.0
    %291 = vst.msk [vmem:[%s283 + $0x3f] sm:$0x1] %vm262, 0.0
    %292 = vst.msk [vmem:[%s283 + $0x47] sm:$0x1] %vm262, 0.0
    %293 = vst.msk [vmem:[%s283 + $0x4f] sm:$0x1] %vm262, 0.0
    %294 = vst.msk [vmem:[%s283 + $0x57] sm:$0x1] %vm262, 0.0
    %295 = vst.msk [vmem:[%s283 + $0x5f] sm:$0x1] %vm262, 0.0
    %296 = vst.msk [vmem:[%s283 + $0x67] sm:$0x1] %vm262, 0.0
    %297 = vst.msk [vmem:[%s283 + $0x6f] sm:$0x1] %vm262, 0.0
    %298 = vst.msk [vmem:[%s283 + $0x77] sm:$0x1] %vm262, 0.0
    %299 = vst.msk [vmem:[%s283 + $0x7f] sm:$0x1] %vm262, 0.0
    %300 = vst.msk [vmem:[%s283 + $0x87] sm:$0x1] %vm262, 0.0
    %301 = vst.msk [vmem:[%s283 + $0x8f] sm:$0x1] %vm262, 0.0
    %302 = vst.msk [vmem:[%s283 + $0x97] sm:$0x1] %vm262, 0.0
    %303 = vst.msk [vmem:[%s283 + $0x9f] sm:$0x1] %vm262, 0.0
    %s304 = scalar_lea.vmem [#allocation2], 8
    %vm305 = vcmask 260096
    %306 = vst.msk [vmem:[%s304 + $0x1] sm:$0x7f] %vm305, %v232
    %307 = vst.msk [vmem:[%s304 + $0x9] sm:$0x7f] %vm305, %v233
    %308 = vst.msk [vmem:[%s304 + $0x11] sm:$0x7f] %vm305, %v234
    %309 = vst.msk [vmem:[%s304 + $0x19] sm:$0x7f] %vm305, %v235
    %310 = vst.msk [vmem:[%s304 + $0x21] sm:$0x7f] %vm305, %v236
    %311 = vst.msk [vmem:[%s304 + $0x29] sm:$0x7f] %vm305, %v237
    %312 = vst.msk [vmem:[%s304 + $0x31] sm:$0x7f] %vm305, %v238
    %313 = vst.msk [vmem:[%s304 + $0x39] sm:$0x7f] %vm305, %v239
    %314 = vst.msk [vmem:[%s304 + $0x51] sm:$0x7f] %vm305, %v240
    %315 = vst.msk [vmem:[%s304 + $0x59] sm:$0x7f] %vm305, %v241
    %316 = vst.msk [vmem:[%s304 + $0x61] sm:$0x7f] %vm305, %v242
    %317 = vst.msk [vmem:[%s304 + $0x69] sm:$0x7f] %vm305, %v243
    %318 = vst.msk [vmem:[%s304 + $0x71] sm:$0x7f] %vm305, %v244
    %319 = vst.msk [vmem:[%s304 + $0x79] sm:$0x7f] %vm305, %v245
    %320 = vst.msk [vmem:[%s304 + $0x81] sm:$0x7f] %vm305, %v246
    %321 = vst.msk [vmem:[%s304 + $0x89] sm:$0x7f] %vm305, %v247
    %s322 = scalar_lea.vmem [#allocation2], 168
    %323 = vst.msk [vmem:[%s322] sm:$0xff] %vm248, %v232
    %324 = vst.msk [vmem:[%s322 + $0x8] sm:$0xff] %vm248, %v233
    %325 = vst.msk [vmem:[%s322 + $0x10] sm:$0xff] %vm248, %v234
    %326 = vst.msk [vmem:[%s322 + $0x18] sm:$0xff] %vm248, %v235
    %327 = vst.msk [vmem:[%s322 + $0x20] sm:$0xff] %vm248, %v236
    %328 = vst.msk [vmem:[%s322 + $0x28] sm:$0xff] %vm248, %v237
    %329 = vst.msk [vmem:[%s322 + $0x30] sm:$0xff] %vm248, %v238
    %330 = vst.msk [vmem:[%s322 + $0x38] sm:$0xff] %vm248, %v239
    %331 = vst.msk [vmem:[%s322 + $0x50] sm:$0xff] %vm248, %v240
    %332 = vst.msk [vmem:[%s322 + $0x58] sm:$0xff] %vm248, %v241
    %333 = vst.msk [vmem:[%s322 + $0x60] sm:$0xff] %vm248, %v242
    %334 = vst.msk [vmem:[%s322 + $0x68] sm:$0xff] %vm248, %v243
    %335 = vst.msk [vmem:[%s322 + $0x70] sm:$0xff] %vm248, %v244
    %336 = vst.msk [vmem:[%s322 + $0x78] sm:$0xff] %vm248, %v245
    %337 = vst.msk [vmem:[%s322 + $0x80] sm:$0xff] %vm248, %v246
    %338 = vst.msk [vmem:[%s322 + $0x88] sm:$0xff] %vm248, %v247
    %s339 = scalar_lea.vmem [#allocation2], 328
    %vm340 = vcmask 261121
    %341 = vst.msk [vmem:[%s339 - $0x1] sm:$0xfe] %vm340, %v232
    %342 = vst.msk [vmem:[%s339 + $0x7] sm:$0xfe] %vm340, %v233
    %343 = vst.msk [vmem:[%s339 + $0xf] sm:$0xfe] %vm340, %v234
    %344 = vst.msk [vmem:[%s339 + $0x17] sm:$0xfe] %vm340, %v235
    %345 = vst.msk [vmem:[%s339 + $0x1f] sm:$0xfe] %vm340, %v236
    %346 = vst.msk [vmem:[%s339 + $0x27] sm:$0xfe] %vm340, %v237
    %347 = vst.msk [vmem:[%s339 + $0x2f] sm:$0xfe] %vm340, %v238
    %348 = vst.msk [vmem:[%s339 + $0x37] sm:$0xfe] %vm340, %v239
    %349 = vst.msk [vmem:[%s339 + $0x4f] sm:$0xfe] %vm340, %v240
    %350 = vst.msk [vmem:[%s339 + $0x57] sm:$0xfe] %vm340, %v241
    %351 = vst.msk [vmem:[%s339 + $0x5f] sm:$0xfe] %vm340, %v242
    %352 = vst.msk [vmem:[%s339 + $0x67] sm:$0xfe] %vm340, %v243
    %353 = vst.msk [vmem:[%s339 + $0x6f] sm:$0xfe] %vm340, %v244
    %354 = vst.msk [vmem:[%s339 + $0x77] sm:$0xfe] %vm340, %v245
    %355 = vst.msk [vmem:[%s339 + $0x7f] sm:$0xfe] %vm340, %v246
    %356 = vst.msk [vmem:[%s339 + $0x87] sm:$0xfe] %vm340, %v247
    %v357 = vld [vmem:[#allocation2] sm:$0xff]
    %v358 = vld [vmem:[#allocation2 + $0x8] sm:$0xff]
    %v359 = vld [vmem:[#allocation2 + $0x10] sm:$0xff]
    %v360 = vld [vmem:[#allocation2 + $0x18] sm:$0xff]
    %v361 = vld [vmem:[#allocation2 + $0x20] sm:$0xff]
    %v362 = vld [vmem:[#allocation2 + $0x28] sm:$0xff]
    %v363 = vld [vmem:[#allocation2 + $0x30] sm:$0xff]
    %v364 = vld [vmem:[#allocation2 + $0x38] sm:$0xff]
    %v365 = vld [vmem:[#allocation2 + $0x50] sm:$0xff]
    %v366 = vld [vmem:[#allocation2 + $0x58] sm:$0xff]
    %v367 = vld [vmem:[#allocation2 + $0x60] sm:$0xff]
    %v368 = vld [vmem:[#allocation2 + $0x68] sm:$0xff]
    %v369 = vld [vmem:[#allocation2 + $0x70] sm:$0xff]
    %v370 = vld [vmem:[#allocation2 + $0x78] sm:$0xff]
    %v371 = vld [vmem:[#allocation2 + $0x80] sm:$0xff]
    %v372 = vld [vmem:[#allocation2 + $0x88] sm:$0xff]
    %v373 = vpack.c.bf16 %v358, %v357
    %v374 = vpack.c.bf16 %v360, %v359
    %v375 = vpack.c.bf16 %v362, %v361
    %v376 = vpack.c.bf16 %v364, %v363
    %v377 = vpack.c.bf16 %v366, %v365
    %v378 = vpack.c.bf16 %v368, %v367
    %v379 = vpack.c.bf16 %v370, %v369
    %v380 = vpack.c.bf16 %v372, %v371
    %v381 = vld [vmem:[#allocation6] sm:$0xf]
    %v382 = vld [vmem:[#allocation6 + $0x4] sm:$0xf]
    %v383 = vld [vmem:[#allocation6 + $0x8] sm:$0xf]
    %v384 = vld [vmem:[#allocation6 + $0xc] sm:$0xf]
    %s385 = scalar_lea.vmem [#allocation2], 160
    %v386 = vld [vmem:[%s385] sm:$0xff]
    %v387 = vld [vmem:[%s385 + $0x8] sm:$0xff]
    %v388 = vld [vmem:[%s385 + $0x10] sm:$0xff]
    %v389 = vld [vmem:[%s385 + $0x18] sm:$0xff]
    %v390 = vld [vmem:[%s385 + $0x20] sm:$0xff]
    %v391 = vld [vmem:[%s385 + $0x28] sm:$0xff]
    %v392 = vld [vmem:[%s385 + $0x30] sm:$0xff]
    %v393 = vld [vmem:[%s385 + $0x38] sm:$0xff]
    %v394 = vld [vmem:[%s385 + $0x50] sm:$0xff]
    %v395 = vld [vmem:[%s385 + $0x58] sm:$0xff]
    %v396 = vld [vmem:[%s385 + $0x60] sm:$0xff]
    %v397 = vld [vmem:[%s385 + $0x68] sm:$0xff]
    %v398 = vld [vmem:[%s385 + $0x70] sm:$0xff]
    %v399 = vld [vmem:[%s385 + $0x78] sm:$0xff]
    %v400 = vld [vmem:[%s385 + $0x80] sm:$0xff]
    %v401 = vld [vmem:[%s385 + $0x88] sm:$0xff]
    %v402 = vpack.c.bf16 %v387, %v386
    %v403 = vpack.c.bf16 %v389, %v388
    %v404 = vpack.c.bf16 %v391, %v390
    %v405 = vpack.c.bf16 %v393, %v392
    %v406 = vpack.c.bf16 %v395, %v394
    %v407 = vpack.c.bf16 %v397, %v396
    %v408 = vpack.c.bf16 %v399, %v398
    %v409 = vpack.c.bf16 %v401, %v400
    %s410 = scalar_lea.vmem [#allocation6], 16
    %v411 = vld [vmem:[%s410] sm:$0xf]
    %v412 = vld [vmem:[%s410 + $0x4] sm:$0xf]
    %v413 = vld [vmem:[%s410 + $0x8] sm:$0xf]
    %v414 = vld [vmem:[%s410 + $0xc] sm:$0xf]
    %v419 = vunpack.c.l.b16 %v411
    %v420 = vunpack.c.l.b16 %v412
    %v421 = vunpack.c.l.b16 %v413
    %v422 = vunpack.c.l.b16 %v414
    %v423 = vpack.c.b16 %v420, %v419
    %v424 = vpack.c.b16 %v422, %v421
    %v428 = vsel %vm248, %v402, 0
    %v431 = vsel %vm248, %v403, 0
    %v434 = vsel %vm248, %v404, 0
    %v437 = vsel %vm248, %v405, 0
    %v440 = vsel %vm248, %v406, 0
    %v443 = vsel %vm248, %v407, 0
    %v446 = vsel %vm248, %v408, 0
    %v449 = vsel %vm248, %v409, 0
    %451 = vmatpush.bf16.msra.mxu0 0
    %452 = vmatpush.bf16.msra.mxu0 0
    %453 = vmatpush.bf16.msra.mxu0 0
    %454 = vmatpush.bf16.msra.mxu0 0
    %455 = vmatpush.bf16.msra.mxu0 0
    %456 = vmatpush.bf16.msra.mxu0 0
    %457 = vmatpush.bf16.msra.mxu0 %v424
    %458 = vmatpush.bf16.msra.mxu0 %v423
    %459 = vmatmul.bf16.gmra.mxu0 %v428
    %v460 = vpop.f32.mrf.mxu0
    %v461 = vadd.f32 0.0, %v460
    %v462 = vpop.f32.mrf.mxu0
    %v463 = vadd.f32 0.0, %v462
    %464 = vmatmul.bf16.gmra.mxu0 %v431
    %v465 = vpop.f32.mrf.mxu0
    %v466 = vadd.f32 0.0, %v465
    %v467 = vpop.f32.mrf.mxu0
    %v468 = vadd.f32 0.0, %v467
    %469 = vmatmul.bf16.gmra.mxu0 %v434
    %v470 = vpop.f32.mrf.mxu0
    %v471 = vadd.f32 0.0, %v470
    %v472 = vpop.f32.mrf.mxu0
    %v473 = vadd.f32 0.0, %v472
    %474 = vmatmul.bf16.gmra.mxu0 %v437
    %v475 = vpop.f32.mrf.mxu0
    %v476 = vadd.f32 0.0, %v475
    %v477 = vpop.f32.mrf.mxu0
    %v478 = vadd.f32 0.0, %v477
    %479 = vmatmul.bf16.gmra.mxu0 %v440
    %v480 = vpop.f32.mrf.mxu0
    %v481 = vadd.f32 0.0, %v480
    %v482 = vpop.f32.mrf.mxu0
    %v483 = vadd.f32 0.0, %v482
    %484 = vmatmul.bf16.gmra.mxu0 %v443
    %v485 = vpop.f32.mrf.mxu0
    %v486 = vadd.f32 0.0, %v485
    %v487 = vpop.f32.mrf.mxu0
    %v488 = vadd.f32 0.0, %v487
    %489 = vmatmul.bf16.gmra.mxu0 %v446
    %v490 = vpop.f32.mrf.mxu0
    %v491 = vadd.f32 0.0, %v490
    %v492 = vpop.f32.mrf.mxu0
    %v493 = vadd.f32 0.0, %v492
    %494 = vmatmul.bf16.gmra.mxu0 %v449
    %v495 = vpop.f32.mrf.mxu0
    %v496 = vadd.f32 0.0, %v495
    %v497 = vpop.f32.mrf.mxu0
    %v498 = vadd.f32 0.0, %v497
    %499 = vdwg.mxu0
    %v504 = vunpack.c.l.b16 %v381
    %v505 = vunpack.c.l.b16 %v382
    %v506 = vunpack.c.l.b16 %v383
    %v507 = vunpack.c.l.b16 %v384
    %v508 = vpack.c.b16 %v505, %v504
    %v509 = vpack.c.b16 %v507, %v506
    %v513 = vsel %vm248, %v373, 0
    %v516 = vsel %vm248, %v374, 0
    %v519 = vsel %vm248, %v375, 0
    %v522 = vsel %vm248, %v376, 0
    %v525 = vsel %vm248, %v377, 0
    %v528 = vsel %vm248, %v378, 0
    %v531 = vsel %vm248, %v379, 0
    %v534 = vsel %vm248, %v380, 0
    %536 = vmatpush.bf16.msra.mxu0 0
    %537 = vmatpush.bf16.msra.mxu0 0
    %538 = vmatpush.bf16.msra.mxu0 0
    %539 = vmatpush.bf16.msra.mxu0 0
    %540 = vmatpush.bf16.msra.mxu0 0
    %541 = vmatpush.bf16.msra.mxu0 0
    %542 = vmatpush.bf16.msra.mxu0 %v509
    %543 = vmatpush.bf16.msra.mxu0 %v508
    %544 = vmatmul.bf16.gmra.mxu0 %v513
    %v545 = vpop.f32.mrf.mxu0
    %v546 = vadd.f32 %v461, %v545
    %v547 = vpop.f32.mrf.mxu0
    %v548 = vadd.f32 %v463, %v547
    %549 = vmatmul.bf16.gmra.mxu0 %v516
    %v550 = vpop.f32.mrf.mxu0
    %v551 = vadd.f32 %v466, %v550
    %v552 = vpop.f32.mrf.mxu0
    %v553 = vadd.f32 %v468, %v552
    %554 = vmatmul.bf16.gmra.mxu0 %v519
    %v555 = vpop.f32.mrf.mxu0
    %v556 = vadd.f32 %v471, %v555
    %v557 = vpop.f32.mrf.mxu0
    %v558 = vadd.f32 %v473, %v557
    %559 = vmatmul.bf16.gmra.mxu0 %v522
    %v560 = vpop.f32.mrf.mxu0
    %v561 = vadd.f32 %v476, %v560
    %v562 = vpop.f32.mrf.mxu0
    %v563 = vadd.f32 %v478, %v562
    %564 = vmatmul.bf16.gmra.mxu0 %v525
    %v565 = vpop.f32.mrf.mxu0
    %v566 = vadd.f32 %v481, %v565
    %v567 = vpop.f32.mrf.mxu0
    %v568 = vadd.f32 %v483, %v567
    %569 = vmatmul.bf16.gmra.mxu0 %v528
    %v570 = vpop.f32.mrf.mxu0
    %v571 = vadd.f32 %v486, %v570
    %v572 = vpop.f32.mrf.mxu0
    %v573 = vadd.f32 %v488, %v572
    %574 = vmatmul.bf16.gmra.mxu0 %v531
    %v575 = vpop.f32.mrf.mxu0
    %v576 = vadd.f32 %v491, %v575
    %v577 = vpop.f32.mrf.mxu0
    %v578 = vadd.f32 %v493, %v577
    %579 = vmatmul.bf16.gmra.mxu0 %v534
    %v580 = vpop.f32.mrf.mxu0
    %v581 = vadd.f32 %v496, %v580
    %v582 = vpop.f32.mrf.mxu0
    %v583 = vadd.f32 %v498, %v582
    %584 = vdwg.mxu0
    %v585 = vld [vmem:[%s283] sm:$0xff]
    %v586 = vld [vmem:[%s283 + $0x8] sm:$0xff]
    %v587 = vld [vmem:[%s283 + $0x10] sm:$0xff]
    %v588 = vld [vmem:[%s283 + $0x18] sm:$0xff]
    %v589 = vld [vmem:[%s283 + $0x20] sm:$0xff]
    %v590 = vld [vmem:[%s283 + $0x28] sm:$0xff]
    %v591 = vld [vmem:[%s283 + $0x30] sm:$0xff]
    %v592 = vld [vmem:[%s283 + $0x38] sm:$0xff]
    %v593 = vld [vmem:[%s283 + $0x50] sm:$0xff]
    %v594 = vld [vmem:[%s283 + $0x58] sm:$0xff]
    %v595 = vld [vmem:[%s283 + $0x60] sm:$0xff]
    %v596 = vld [vmem:[%s283 + $0x68] sm:$0xff]
    %v597 = vld [vmem:[%s283 + $0x70] sm:$0xff]
    %v598 = vld [vmem:[%s283 + $0x78] sm:$0xff]
    %v599 = vld [vmem:[%s283 + $0x80] sm:$0xff]
    %v600 = vld [vmem:[%s283 + $0x88] sm:$0xff]
    %v601 = vpack.c.bf16 %v586, %v585
    %v602 = vpack.c.bf16 %v588, %v587
    %v603 = vpack.c.bf16 %v590, %v589
    %v604 = vpack.c.bf16 %v592, %v591
    %v605 = vpack.c.bf16 %v594, %v593
    %v606 = vpack.c.bf16 %v596, %v595
    %v607 = vpack.c.bf16 %v598, %v597
    %v608 = vpack.c.bf16 %v600, %v599
    %s609 = scalar_lea.vmem [#allocation6], 32
    %v610 = vld [vmem:[%s609] sm:$0xf]
    %v611 = vld [vmem:[%s609 + $0x4] sm:$0xf]
    %v612 = vld [vmem:[%s609 + $0x8] sm:$0xf]
    %v613 = vld [vmem:[%s609 + $0xc] sm:$0xf]
    %v618 = vunpack.c.l.b16 %v610
    %v619 = vunpack.c.l.b16 %v611
    %v620 = vunpack.c.l.b16 %v612
    %v621 = vunpack.c.l.b16 %v613
    %v622 = vpack.c.b16 %v619, %v618
    %v623 = vpack.c.b16 %v621, %v620
    %v627 = vsel %vm248, %v601, 0
    %v630 = vsel %vm248, %v602, 0
    %v633 = vsel %vm248, %v603, 0
    %v636 = vsel %vm248, %v604, 0
    %v639 = vsel %vm248, %v605, 0
    %v642 = vsel %vm248, %v606, 0
    %v645 = vsel %vm248, %v607, 0
    %v648 = vsel %vm248, %v608, 0
    %650 = vmatpush.bf16.msra.mxu0 0
    %651 = vmatpush.bf16.msra.mxu0 0
    %652 = vmatpush.bf16.msra.mxu0 0
    %653 = vmatpush.bf16.msra.mxu0 0
    %654 = vmatpush.bf16.msra.mxu0 0
    %655 = vmatpush.bf16.msra.mxu0 0
    %656 = vmatpush.bf16.msra.mxu0 %v623
    %657 = vmatpush.bf16.msra.mxu0 %v622
    %658 = vmatmul.bf16.gmra.mxu0 %v627
    %v659 = vpop.f32.mrf.mxu0
    %v660 = vadd.f32 0.0, %v659
    %v661 = vpop.f32.mrf.mxu0
    %v662 = vadd.f32 0.0, %v661
    %663 = vmatmul.bf16.gmra.mxu0 %v630
    %v664 = vpop.f32.mrf.mxu0
    %v665 = vadd.f32 0.0, %v664
    %v666 = vpop.f32.mrf.mxu0
    %v667 = vadd.f32 0.0, %v666
    %668 = vmatmul.bf16.gmra.mxu0 %v633
    %v669 = vpop.f32.mrf.mxu0
    %v670 = vadd.f32 0.0, %v669
    %v671 = vpop.f32.mrf.mxu0
    %v672 = vadd.f32 0.0, %v671
    %673 = vmatmul.bf16.gmra.mxu0 %v636
    %v674 = vpop.f32.mrf.mxu0
    %v675 = vadd.f32 0.0, %v674
    %v676 = vpop.f32.mrf.mxu0
    %v677 = vadd.f32 0.0, %v676
    %678 = vmatmul.bf16.gmra.mxu0 %v639
    %v679 = vpop.f32.mrf.mxu0
    %v680 = vadd.f32 0.0, %v679
    %v681 = vpop.f32.mrf.mxu0
    %v682 = vadd.f32 0.0, %v681
    %683 = vmatmul.bf16.gmra.mxu0 %v642
    %v684 = vpop.f32.mrf.mxu0
    %v685 = vadd.f32 0.0, %v684
    %v686 = vpop.f32.mrf.mxu0
    %v687 = vadd.f32 0.0, %v686
    %688 = vmatmul.bf16.gmra.mxu0 %v645
    %v689 = vpop.f32.mrf.mxu0
    %v690 = vadd.f32 0.0, %v689
    %v691 = vpop.f32.mrf.mxu0
    %v692 = vadd.f32 0.0, %v691
    %693 = vmatmul.bf16.gmra.mxu0 %v648
    %v694 = vpop.f32.mrf.mxu0
    %v695 = vadd.f32 0.0, %v694
    %v696 = vpop.f32.mrf.mxu0
    %v697 = vadd.f32 0.0, %v696
    %698 = vdwg.mxu0
    %v699 = vadd.f32 %v546, %v660
    %v700 = vadd.f32 %v548, %v662
    %v701 = vadd.f32 %v551, %v665
    %v702 = vadd.f32 %v553, %v667
    %v703 = vadd.f32 %v556, %v670
    %v704 = vadd.f32 %v558, %v672
    %v705 = vadd.f32 %v561, %v675
    %v706 = vadd.f32 %v563, %v677
    %v707 = vadd.f32 %v566, %v680
    %v708 = vadd.f32 %v568, %v682
    %v709 = vadd.f32 %v571, %v685
    %v710 = vadd.f32 %v573, %v687
    %v711 = vadd.f32 %v576, %v690
    %v712 = vadd.f32 %v578, %v692
    %v713 = vadd.f32 %v581, %v695
    %v714 = vadd.f32 %v583, %v697
    %v715 = vld [vmem:[%s304] sm:$0xff]
    %v716 = vld [vmem:[%s304 + $0x8] sm:$0xff]
    %v717 = vld [vmem:[%s304 + $0x10] sm:$0xff]
    %v718 = vld [vmem:[%s304 + $0x18] sm:$0xff]
    %v719 = vld [vmem:[%s304 + $0x20] sm:$0xff]
    %v720 = vld [vmem:[%s304 + $0x28] sm:$0xff]
    %v721 = vld [vmem:[%s304 + $0x30] sm:$0xff]
    %v722 = vld [vmem:[%s304 + $0x38] sm:$0xff]
    %v723 = vld [vmem:[%s304 + $0x50] sm:$0xff]
    %v724 = vld [vmem:[%s304 + $0x58] sm:$0xff]
    %v725 = vld [vmem:[%s304 + $0x60] sm:$0xff]
    %v726 = vld [vmem:[%s304 + $0x68] sm:$0xff]
    %v727 = vld [vmem:[%s304 + $0x70] sm:$0xff]
    %v728 = vld [vmem:[%s304 + $0x78] sm:$0xff]
    %v729 = vld [vmem:[%s304 + $0x80] sm:$0xff]
    %v730 = vld [vmem:[%s304 + $0x88] sm:$0xff]
    %v731 = vpack.c.bf16 %v716, %v715
    %v732 = vpack.c.bf16 %v718, %v717
    %v733 = vpack.c.bf16 %v720, %v719
    %v734 = vpack.c.bf16 %v722, %v721
    %v735 = vpack.c.bf16 %v724, %v723
    %v736 = vpack.c.bf16 %v726, %v725
    %v737 = vpack.c.bf16 %v728, %v727
    %v738 = vpack.c.bf16 %v730, %v729
    %s739 = scalar_lea.vmem [#allocation6], 48
    %v740 = vld [vmem:[%s739] sm:$0xf]
    %v741 = vld [vmem:[%s739 + $0x4] sm:$0xf]
    %v742 = vld [vmem:[%s739 + $0x8] sm:$0xf]
    %v743 = vld [vmem:[%s739 + $0xc] sm:$0xf]
    %v748 = vunpack.c.l.b16 %v740
    %v749 = vunpack.c.l.b16 %v741
    %v750 = vunpack.c.l.b16 %v742
    %v751 = vunpack.c.l.b16 %v743
    %v752 = vpack.c.b16 %v749, %v748
    %v753 = vpack.c.b16 %v751, %v750
    %v757 = vsel %vm248, %v731, 0
    %v760 = vsel %vm248, %v732, 0
    %v763 = vsel %vm248, %v733, 0
    %v766 = vsel %vm248, %v734, 0
    %v769 = vsel %vm248, %v735, 0
    %v772 = vsel %vm248, %v736, 0
    %v775 = vsel %vm248, %v737, 0
    %v778 = vsel %vm248, %v738, 0
    %780 = vmatpush.bf16.msra.mxu0 0
    %781 = vmatpush.bf16.msra.mxu0 0
    %782 = vmatpush.bf16.msra.mxu0 0
    %783 = vmatpush.bf16.msra.mxu0 0
    %784 = vmatpush.bf16.msra.mxu0 0
    %785 = vmatpush.bf16.msra.mxu0 0
    %786 = vmatpush.bf16.msra.mxu0 %v753
    %787 = vmatpush.bf16.msra.mxu0 %v752
    %788 = vmatmul.bf16.gmra.mxu0 %v757
    %v789 = vpop.f32.mrf.mxu0
    %v790 = vadd.f32 0.0, %v789
    %v791 = vpop.f32.mrf.mxu0
    %v792 = vadd.f32 0.0, %v791
    %793 = vmatmul.bf16.gmra.mxu0 %v760
    %v794 = vpop.f32.mrf.mxu0
    %v795 = vadd.f32 0.0, %v794
    %v796 = vpop.f32.mrf.mxu0
    %v797 = vadd.f32 0.0, %v796
    %798 = vmatmul.bf16.gmra.mxu0 %v763
    %v799 = vpop.f32.mrf.mxu0
    %v800 = vadd.f32 0.0, %v799
    %v801 = vpop.f32.mrf.mxu0
    %v802 = vadd.f32 0.0, %v801
    %803 = vmatmul.bf16.gmra.mxu0 %v766
    %v804 = vpop.f32.mrf.mxu0
    %v805 = vadd.f32 0.0, %v804
    %v806 = vpop.f32.mrf.mxu0
    %v807 = vadd.f32 0.0, %v806
    %808 = vmatmul.bf16.gmra.mxu0 %v769
    %v809 = vpop.f32.mrf.mxu0
    %v810 = vadd.f32 0.0, %v809
    %v811 = vpop.f32.mrf.mxu0
    %v812 = vadd.f32 0.0, %v811
    %813 = vmatmul.bf16.gmra.mxu0 %v772
    %v814 = vpop.f32.mrf.mxu0
    %v815 = vadd.f32 0.0, %v814
    %v816 = vpop.f32.mrf.mxu0
    %v817 = vadd.f32 0.0, %v816
    %818 = vmatmul.bf16.gmra.mxu0 %v775
    %v819 = vpop.f32.mrf.mxu0
    %v820 = vadd.f32 0.0, %v819
    %v821 = vpop.f32.mrf.mxu0
    %v822 = vadd.f32 0.0, %v821
    %823 = vmatmul.bf16.gmra.mxu0 %v778
    %v824 = vpop.f32.mrf.mxu0
    %v825 = vadd.f32 0.0, %v824
    %v826 = vpop.f32.mrf.mxu0
    %v827 = vadd.f32 0.0, %v826
    %828 = vdwg.mxu0
    %v829 = vadd.f32 %v699, %v790
    %v830 = vadd.f32 %v700, %v792
    %v831 = vadd.f32 %v701, %v795
    %v832 = vadd.f32 %v702, %v797
    %v833 = vadd.f32 %v703, %v800
    %v834 = vadd.f32 %v704, %v802
    %v835 = vadd.f32 %v705, %v805
    %v836 = vadd.f32 %v706, %v807
    %v837 = vadd.f32 %v707, %v810
    %v838 = vadd.f32 %v708, %v812
    %v839 = vadd.f32 %v709, %v815
    %v840 = vadd.f32 %v710, %v817
    %v841 = vadd.f32 %v711, %v820
    %v842 = vadd.f32 %v712, %v822
    %v843 = vadd.f32 %v713, %v825
    %v844 = vadd.f32 %v714, %v827
    %v845 = vld [vmem:[%s322] sm:$0xff]
    %v846 = vld [vmem:[%s322 + $0x8] sm:$0xff]
    %v847 = vld [vmem:[%s322 + $0x10] sm:$0xff]
    %v848 = vld [vmem:[%s322 + $0x18] sm:$0xff]
    %v849 = vld [vmem:[%s322 + $0x20] sm:$0xff]
    %v850 = vld [vmem:[%s322 + $0x28] sm:$0xff]
    %v851 = vld [vmem:[%s322 + $0x30] sm:$0xff]
    %v852 = vld [vmem:[%s322 + $0x38] sm:$0xff]
    %v853 = vld [vmem:[%s322 + $0x50] sm:$0xff]
    %v854 = vld [vmem:[%s322 + $0x58] sm:$0xff]
    %v855 = vld [vmem:[%s322 + $0x60] sm:$0xff]
    %v856 = vld [vmem:[%s322 + $0x68] sm:$0xff]
    %v857 = vld [vmem:[%s322 + $0x70] sm:$0xff]
    %v858 = vld [vmem:[%s322 + $0x78] sm:$0xff]
    %v859 = vld [vmem:[%s322 + $0x80] sm:$0xff]
    %v860 = vld [vmem:[%s322 + $0x88] sm:$0xff]
    %v861 = vpack.c.bf16 %v846, %v845
    %v862 = vpack.c.bf16 %v848, %v847
    %v863 = vpack.c.bf16 %v850, %v849
    %v864 = vpack.c.bf16 %v852, %v851
    %v865 = vpack.c.bf16 %v854, %v853
    %v866 = vpack.c.bf16 %v856, %v855
    %v867 = vpack.c.bf16 %v858, %v857
    %v868 = vpack.c.bf16 %v860, %v859
    %s869 = scalar_lea.vmem [#allocation6], 64
    %v870 = vld [vmem:[%s869] sm:$0xf]
    %v871 = vld [vmem:[%s869 + $0x4] sm:$0xf]
    %v872 = vld [vmem:[%s869 + $0x8] sm:$0xf]
    %v873 = vld [vmem:[%s869 + $0xc] sm:$0xf]
    %v878 = vunpack.c.l.b16 %v870
    %v879 = vunpack.c.l.b16 %v871
    %v880 = vunpack.c.l.b16 %v872
    %v881 = vunpack.c.l.b16 %v873
    %v882 = vpack.c.b16 %v879, %v878
    %v883 = vpack.c.b16 %v881, %v880
    %v887 = vsel %vm248, %v861, 0
    %v890 = vsel %vm248, %v862, 0
    %v893 = vsel %vm248, %v863, 0
    %v896 = vsel %vm248, %v864, 0
    %v899 = vsel %vm248, %v865, 0
    %v902 = vsel %vm248, %v866, 0
    %v905 = vsel %vm248, %v867, 0
    %v908 = vsel %vm248, %v868, 0
    %910 = vmatpush.bf16.msra.mxu0 0
    %911 = vmatpush.bf16.msra.mxu0 0
    %912 = vmatpush.bf16.msra.mxu0 0
    %913 = vmatpush.bf16.msra.mxu0 0
    %914 = vmatpush.bf16.msra.mxu0 0
    %915 = vmatpush.bf16.msra.mxu0 0
    %916 = vmatpush.bf16.msra.mxu0 %v883
    %917 = vmatpush.bf16.msra.mxu0 %v882
    %918 = vmatmul.bf16.gmra.mxu0 %v887
    %v919 = vpop.f32.mrf.mxu0
    %v920 = vadd.f32 0.0, %v919
    %v921 = vpop.f32.mrf.mxu0
    %v922 = vadd.f32 0.0, %v921
    %923 = vmatmul.bf16.gmra.mxu0 %v890
    %v924 = vpop.f32.mrf.mxu0
    %v925 = vadd.f32 0.0, %v924
    %v926 = vpop.f32.mrf.mxu0
    %v927 = vadd.f32 0.0, %v926
    %928 = vmatmul.bf16.gmra.mxu0 %v893
    %v929 = vpop.f32.mrf.mxu0
    %v930 = vadd.f32 0.0, %v929
    %v931 = vpop.f32.mrf.mxu0
    %v932 = vadd.f32 0.0, %v931
    %933 = vmatmul.bf16.gmra.mxu0 %v896
    %v934 = vpop.f32.mrf.mxu0
    %v935 = vadd.f32 0.0, %v934
    %v936 = vpop.f32.mrf.mxu0
    %v937 = vadd.f32 0.0, %v936
    %938 = vmatmul.bf16.gmra.mxu0 %v899
    %v939 = vpop.f32.mrf.mxu0
    %v940 = vadd.f32 0.0, %v939
    %v941 = vpop.f32.mrf.mxu0
    %v942 = vadd.f32 0.0, %v941
    %943 = vmatmul.bf16.gmra.mxu0 %v902
    %v944 = vpop.f32.mrf.mxu0
    %v945 = vadd.f32 0.0, %v944
    %v946 = vpop.f32.mrf.mxu0
    %v947 = vadd.f32 0.0, %v946
    %948 = vmatmul.bf16.gmra.mxu0 %v905
    %v949 = vpop.f32.mrf.mxu0
    %v950 = vadd.f32 0.0, %v949
    %v951 = vpop.f32.mrf.mxu0
    %v952 = vadd.f32 0.0, %v951
    %953 = vmatmul.bf16.gmra.mxu0 %v908
    %v954 = vpop.f32.mrf.mxu0
    %v955 = vadd.f32 0.0, %v954
    %v956 = vpop.f32.mrf.mxu0
    %v957 = vadd.f32 0.0, %v956
    %958 = vdwg.mxu0
    %v959 = vadd.f32 %v829, %v920
    %v960 = vadd.f32 %v830, %v922
    %v961 = vadd.f32 %v831, %v925
    %v962 = vadd.f32 %v832, %v927
    %v963 = vadd.f32 %v833, %v930
    %v964 = vadd.f32 %v834, %v932
    %v965 = vadd.f32 %v835, %v935
    %v966 = vadd.f32 %v836, %v937
    %v967 = vadd.f32 %v837, %v940
    %v968 = vadd.f32 %v838, %v942
    %v969 = vadd.f32 %v839, %v945
    %v970 = vadd.f32 %v840, %v947
    %v971 = vadd.f32 %v841, %v950
    %v972 = vadd.f32 %v842, %v952
    %v973 = vadd.f32 %v843, %v955
    %v974 = vadd.f32 %v844, %v957
    %v975 = vld [vmem:[%s339] sm:$0xff]
    %v976 = vld [vmem:[%s339 + $0x8] sm:$0xff]
    %v977 = vld [vmem:[%s339 + $0x10] sm:$0xff]
    %v978 = vld [vmem:[%s339 + $0x18] sm:$0xff]
    %v979 = vld [vmem:[%s339 + $0x20] sm:$0xff]
    %v980 = vld [vmem:[%s339 + $0x28] sm:$0xff]
    %v981 = vld [vmem:[%s339 + $0x30] sm:$0xff]
    %v982 = vld [vmem:[%s339 + $0x38] sm:$0xff]
    %v983 = vld [vmem:[%s339 + $0x50] sm:$0xff]
    %v984 = vld [vmem:[%s339 + $0x58] sm:$0xff]
    %v985 = vld [vmem:[%s339 + $0x60] sm:$0xff]
    %v986 = vld [vmem:[%s339 + $0x68] sm:$0xff]
    %v987 = vld [vmem:[%s339 + $0x70] sm:$0xff]
    %v988 = vld [vmem:[%s339 + $0x78] sm:$0xff]
    %v989 = vld [vmem:[%s339 + $0x80] sm:$0xff]
    %v990 = vld [vmem:[%s339 + $0x88] sm:$0xff]
    %v991 = vpack.c.bf16 %v976, %v975
    %v992 = vpack.c.bf16 %v978, %v977
    %v993 = vpack.c.bf16 %v980, %v979
    %v994 = vpack.c.bf16 %v982, %v981
    %v995 = vpack.c.bf16 %v984, %v983
    %v996 = vpack.c.bf16 %v986, %v985
    %v997 = vpack.c.bf16 %v988, %v987
    %v998 = vpack.c.bf16 %v990, %v989
    %s999 = scalar_lea.vmem [#allocation6], 80
    %v1000 = vld [vmem:[%s999] sm:$0xf]
    %v1001 = vld [vmem:[%s999 + $0x4] sm:$0xf]
    %v1002 = vld [vmem:[%s999 + $0x8] sm:$0xf]
    %v1003 = vld [vmem:[%s999 + $0xc] sm:$0xf]
    %v1008 = vunpack.c.l.b16 %v1000
    %v1009 = vunpack.c.l.b16 %v1001
    %v1010 = vunpack.c.l.b16 %v1002
    %v1011 = vunpack.c.l.b16 %v1003
    %v1012 = vpack.c.b16 %v1009, %v1008
    %v1013 = vpack.c.b16 %v1011, %v1010
    %v1017 = vsel %vm248, %v991, 0
    %v1020 = vsel %vm248, %v992, 0
    %v1023 = vsel %vm248, %v993, 0
    %v1026 = vsel %vm248, %v994, 0
    %v1029 = vsel %vm248, %v995, 0
    %v1032 = vsel %vm248, %v996, 0
    %v1035 = vsel %vm248, %v997, 0
    %v1038 = vsel %vm248, %v998, 0
    %1040 = vmatpush.bf16.msra.mxu0 0
    %1041 = vmatpush.bf16.msra.mxu0 0
    %1042 = vmatpush.bf16.msra.mxu0 0
    %1043 = vmatpush.bf16.msra.mxu0 0
    %1044 = vmatpush.bf16.msra.mxu0 0
    %1045 = vmatpush.bf16.msra.mxu0 0
    %1046 = vmatpush.bf16.msra.mxu0 %v1013
    %1047 = vmatpush.bf16.msra.mxu0 %v1012
    %1048 = vmatmul.bf16.gmra.mxu0 %v1017
    %v1049 = vpop.f32.mrf.mxu0
    %v1050 = vadd.f32 0.0, %v1049
    %v1051 = vpop.f32.mrf.mxu0
    %v1052 = vadd.f32 0.0, %v1051
    %1053 = vmatmul.bf16.gmra.mxu0 %v1020
    %v1054 = vpop.f32.mrf.mxu0
    %v1055 = vadd.f32 0.0, %v1054
    %v1056 = vpop.f32.mrf.mxu0
    %v1057 = vadd.f32 0.0, %v1056
    %1058 = vmatmul.bf16.gmra.mxu0 %v1023
    %v1059 = vpop.f32.mrf.mxu0
    %v1060 = vadd.f32 0.0, %v1059
    %v1061 = vpop.f32.mrf.mxu0
    %v1062 = vadd.f32 0.0, %v1061
    %1063 = vmatmul.bf16.gmra.mxu0 %v1026
    %v1064 = vpop.f32.mrf.mxu0
    %v1065 = vadd.f32 0.0, %v1064
    %v1066 = vpop.f32.mrf.mxu0
    %v1067 = vadd.f32 0.0, %v1066
    %1068 = vmatmul.bf16.gmra.mxu0 %v1029
    %v1069 = vpop.f32.mrf.mxu0
    %v1070 = vadd.f32 0.0, %v1069
    %v1071 = vpop.f32.mrf.mxu0
    %v1072 = vadd.f32 0.0, %v1071
    %1073 = vmatmul.bf16.gmra.mxu0 %v1032
    %v1074 = vpop.f32.mrf.mxu0
    %v1075 = vadd.f32 0.0, %v1074
    %v1076 = vpop.f32.mrf.mxu0
    %v1077 = vadd.f32 0.0, %v1076
    %1078 = vmatmul.bf16.gmra.mxu0 %v1035
    %v1079 = vpop.f32.mrf.mxu0
    %v1080 = vadd.f32 0.0, %v1079
    %v1081 = vpop.f32.mrf.mxu0
    %v1082 = vadd.f32 0.0, %v1081
    %1083 = vmatmul.bf16.gmra.mxu0 %v1038
    %v1084 = vpop.f32.mrf.mxu0
    %v1085 = vadd.f32 0.0, %v1084
    %v1086 = vpop.f32.mrf.mxu0
    %v1087 = vadd.f32 0.0, %v1086
    %1088 = vdwg.mxu0
    %v1089 = vadd.f32 %v959, %v1050
    %v1090 = vadd.f32 %v960, %v1052
    %v1091 = vadd.f32 %v961, %v1055
    %v1092 = vadd.f32 %v962, %v1057
    %v1093 = vadd.f32 %v963, %v1060
    %v1094 = vadd.f32 %v964, %v1062
    %v1095 = vadd.f32 %v965, %v1065
    %v1096 = vadd.f32 %v966, %v1067
    %v1097 = vadd.f32 %v967, %v1070
    %v1098 = vadd.f32 %v968, %v1072
    %v1099 = vadd.f32 %v969, %v1075
    %v1100 = vadd.f32 %v970, %v1077
    %v1101 = vadd.f32 %v971, %v1080
    %v1102 = vadd.f32 %v972, %v1082
    %v1103 = vadd.f32 %v973, %v1085
    %v1104 = vadd.f32 %v974, %v1087
    %s1105 = scalar_lea.vmem [#allocation2], 16
    %v1106 = vld [vmem:[%s1105] sm:$0xff]
    %v1107 = vld [vmem:[%s1105 + $0x8] sm:$0xff]
    %v1108 = vld [vmem:[%s1105 + $0x10] sm:$0xff]
    %v1109 = vld [vmem:[%s1105 + $0x18] sm:$0xff]
    %v1110 = vld [vmem:[%s1105 + $0x20] sm:$0xff]
    %v1111 = vld [vmem:[%s1105 + $0x28] sm:$0xff]
    %v1112 = vld [vmem:[%s1105 + $0x30] sm:$0xff]
    %v1113 = vld [vmem:[%s1105 + $0x38] sm:$0xff]
    %v1114 = vld [vmem:[%s1105 + $0x50] sm:$0xff]
    %v1115 = vld [vmem:[%s1105 + $0x58] sm:$0xff]
    %v1116 = vld [vmem:[%s1105 + $0x60] sm:$0xff]
    %v1117 = vld [vmem:[%s1105 + $0x68] sm:$0xff]
    %v1118 = vld [vmem:[%s1105 + $0x70] sm:$0xff]
    %v1119 = vld [vmem:[%s1105 + $0x78] sm:$0xff]
    %v1120 = vld [vmem:[%s1105 + $0x80] sm:$0xff]
    %v1121 = vld [vmem:[%s1105 + $0x88] sm:$0xff]
    %v1122 = vpack.c.bf16 %v1107, %v1106
    %v1123 = vpack.c.bf16 %v1109, %v1108
    %v1124 = vpack.c.bf16 %v1111, %v1110
    %v1125 = vpack.c.bf16 %v1113, %v1112
    %v1126 = vpack.c.bf16 %v1115, %v1114
    %v1127 = vpack.c.bf16 %v1117, %v1116
    %v1128 = vpack.c.bf16 %v1119, %v1118
    %v1129 = vpack.c.bf16 %v1121, %v1120
    %s1130 = scalar_lea.vmem [#allocation6], 96
    %v1131 = vld [vmem:[%s1130] sm:$0xf]
    %v1132 = vld [vmem:[%s1130 + $0x4] sm:$0xf]
    %v1133 = vld [vmem:[%s1130 + $0x8] sm:$0xf]
    %v1134 = vld [vmem:[%s1130 + $0xc] sm:$0xf]
    %v1139 = vunpack.c.l.b16 %v1131
    %v1140 = vunpack.c.l.b16 %v1132
    %v1141 = vunpack.c.l.b16 %v1133
    %v1142 = vunpack.c.l.b16 %v1134
    %v1143 = vpack.c.b16 %v1140, %v1139
    %v1144 = vpack.c.b16 %v1142, %v1141
    %v1148 = vsel %vm248, %v1122, 0
    %v1151 = vsel %vm248, %v1123, 0
    %v1154 = vsel %vm248, %v1124, 0
    %v1157 = vsel %vm248, %v1125, 0
    %v1160 = vsel %vm248, %v1126, 0
    %v1163 = vsel %vm248, %v1127, 0
    %v1166 = vsel %vm248, %v1128, 0
    %v1169 = vsel %vm248, %v1129, 0
    %1171 = vmatpush.bf16.msra.mxu0 0
    %1172 = vmatpush.bf16.msra.mxu0 0
    %1173 = vmatpush.bf16.msra.mxu0 0
    %1174 = vmatpush.bf16.msra.mxu0 0
    %1175 = vmatpush.bf16.msra.mxu0 0
    %1176 = vmatpush.bf16.msra.mxu0 0
    %1177 = vmatpush.bf16.msra.mxu0 %v1144
    %1178 = vmatpush.bf16.msra.mxu0 %v1143
    %1179 = vmatmul.bf16.gmra.mxu0 %v1148
    %v1180 = vpop.f32.mrf.mxu0
    %v1181 = vadd.f32 0.0, %v1180
    %v1182 = vpop.f32.mrf.mxu0
    %v1183 = vadd.f32 0.0, %v1182
    %1184 = vmatmul.bf16.gmra.mxu0 %v1151
    %v1185 = vpop.f32.mrf.mxu0
    %v1186 = vadd.f32 0.0, %v1185
    %v1187 = vpop.f32.mrf.mxu0
    %v1188 = vadd.f32 0.0, %v1187
    %1189 = vmatmul.bf16.gmra.mxu0 %v1154
    %v1190 = vpop.f32.mrf.mxu0
    %v1191 = vadd.f32 0.0, %v1190
    %v1192 = vpop.f32.mrf.mxu0
    %v1193 = vadd.f32 0.0, %v1192
    %1194 = vmatmul.bf16.gmra.mxu0 %v1157
    %v1195 = vpop.f32.mrf.mxu0
    %v1196 = vadd.f32 0.0, %v1195
    %v1197 = vpop.f32.mrf.mxu0
    %v1198 = vadd.f32 0.0, %v1197
    %1199 = vmatmul.bf16.gmra.mxu0 %v1160
    %v1200 = vpop.f32.mrf.mxu0
    %v1201 = vadd.f32 0.0, %v1200
    %v1202 = vpop.f32.mrf.mxu0
    %v1203 = vadd.f32 0.0, %v1202
    %1204 = vmatmul.bf16.gmra.mxu0 %v1163
    %v1205 = vpop.f32.mrf.mxu0
    %v1206 = vadd.f32 0.0, %v1205
    %v1207 = vpop.f32.mrf.mxu0
    %v1208 = vadd.f32 0.0, %v1207
    %1209 = vmatmul.bf16.gmra.mxu0 %v1166
    %v1210 = vpop.f32.mrf.mxu0
    %v1211 = vadd.f32 0.0, %v1210
    %v1212 = vpop.f32.mrf.mxu0
    %v1213 = vadd.f32 0.0, %v1212
    %1214 = vmatmul.bf16.gmra.mxu0 %v1169
    %v1215 = vpop.f32.mrf.mxu0
    %v1216 = vadd.f32 0.0, %v1215
    %v1217 = vpop.f32.mrf.mxu0
    %v1218 = vadd.f32 0.0, %v1217
    %1219 = vdwg.mxu0
    %v1220 = vadd.f32 %v1089, %v1181
    %v1221 = vadd.f32 %v1090, %v1183
    %v1222 = vadd.f32 %v1091, %v1186
    %v1223 = vadd.f32 %v1092, %v1188
    %v1224 = vadd.f32 %v1093, %v1191
    %v1225 = vadd.f32 %v1094, %v1193
    %v1226 = vadd.f32 %v1095, %v1196
    %v1227 = vadd.f32 %v1096, %v1198
    %v1228 = vadd.f32 %v1097, %v1201
    %v1229 = vadd.f32 %v1098, %v1203
    %v1230 = vadd.f32 %v1099, %v1206
    %v1231 = vadd.f32 %v1100, %v1208
    %v1232 = vadd.f32 %v1101, %v1211
    %v1233 = vadd.f32 %v1102, %v1213
    %v1234 = vadd.f32 %v1103, %v1216
    %v1235 = vadd.f32 %v1104, %v1218
    %s1236 = scalar_lea.vmem [#allocation2], 176
    %v1237 = vld [vmem:[%s1236] sm:$0xff]
    %v1238 = vld [vmem:[%s1236 + $0x8] sm:$0xff]
    %v1239 = vld [vmem:[%s1236 + $0x10] sm:$0xff]
    %v1240 = vld [vmem:[%s1236 + $0x18] sm:$0xff]
    %v1241 = vld [vmem:[%s1236 + $0x20] sm:$0xff]
    %v1242 = vld [vmem:[%s1236 + $0x28] sm:$0xff]
    %v1243 = vld [vmem:[%s1236 + $0x30] sm:$0xff]
    %v1244 = vld [vmem:[%s1236 + $0x38] sm:$0xff]
    %v1245 = vld [vmem:[%s1236 + $0x50] sm:$0xff]
    %v1246 = vld [vmem:[%s1236 + $0x58] sm:$0xff]
    %v1247 = vld [vmem:[%s1236 + $0x60] sm:$0xff]
    %v1248 = vld [vmem:[%s1236 + $0x68] sm:$0xff]
    %v1249 = vld [vmem:[%s1236 + $0x70] sm:$0xff]
    %v1250 = vld [vmem:[%s1236 + $0x78] sm:$0xff]
    %v1251 = vld [vmem:[%s1236 + $0x80] sm:$0xff]
    %v1252 = vld [vmem:[%s1236 + $0x88] sm:$0xff]
    %v1253 = vpack.c.bf16 %v1238, %v1237
    %v1254 = vpack.c.bf16 %v1240, %v1239
    %v1255 = vpack.c.bf16 %v1242, %v1241
    %v1256 = vpack.c.bf16 %v1244, %v1243
    %v1257 = vpack.c.bf16 %v1246, %v1245
    %v1258 = vpack.c.bf16 %v1248, %v1247
    %v1259 = vpack.c.bf16 %v1250, %v1249
    %v1260 = vpack.c.bf16 %v1252, %v1251
    %s1261 = scalar_lea.vmem [#allocation6], 112
    %v1262 = vld [vmem:[%s1261] sm:$0xf]
    %v1263 = vld [vmem:[%s1261 + $0x4] sm:$0xf]
    %v1264 = vld [vmem:[%s1261 + $0x8] sm:$0xf]
    %v1265 = vld [vmem:[%s1261 + $0xc] sm:$0xf]
    %v1270 = vunpack.c.l.b16 %v1262
    %v1271 = vunpack.c.l.b16 %v1263
    %v1272 = vunpack.c.l.b16 %v1264
    %v1273 = vunpack.c.l.b16 %v1265
    %v1274 = vpack.c.b16 %v1271, %v1270
    %v1275 = vpack.c.b16 %v1273, %v1272
    %v1279 = vsel %vm248, %v1253, 0
    %v1282 = vsel %vm248, %v1254, 0
    %v1285 = vsel %vm248, %v1255, 0
    %v1288 = vsel %vm248, %v1256, 0
    %v1291 = vsel %vm248, %v1257, 0
    %v1294 = vsel %vm248, %v1258, 0
    %v1297 = vsel %vm248, %v1259, 0
    %v1300 = vsel %vm248, %v1260, 0
    %1302 = vmatpush.bf16.msra.mxu0 0
    %1303 = vmatpush.bf16.msra.mxu0 0
    %1304 = vmatpush.bf16.msra.mxu0 0
    %1305 = vmatpush.bf16.msra.mxu0 0
    %1306 = vmatpush.bf16.msra.mxu0 0
    %1307 = vmatpush.bf16.msra.mxu0 0
    %1308 = vmatpush.bf16.msra.mxu0 %v1275
    %1309 = vmatpush.bf16.msra.mxu0 %v1274
    %1310 = vmatmul.bf16.gmra.mxu0 %v1279
    %v1311 = vpop.f32.mrf.mxu0
    %v1312 = vadd.f32 0.0, %v1311
    %v1313 = vpop.f32.mrf.mxu0
    %v1314 = vadd.f32 0.0, %v1313
    %1315 = vmatmul.bf16.gmra.mxu0 %v1282
    %v1316 = vpop.f32.mrf.mxu0
    %v1317 = vadd.f32 0.0, %v1316
    %v1318 = vpop.f32.mrf.mxu0
    %v1319 = vadd.f32 0.0, %v1318
    %1320 = vmatmul.bf16.gmra.mxu0 %v1285
    %v1321 = vpop.f32.mrf.mxu0
    %v1322 = vadd.f32 0.0, %v1321
    %v1323 = vpop.f32.mrf.mxu0
    %v1324 = vadd.f32 0.0, %v1323
    %1325 = vmatmul.bf16.gmra.mxu0 %v1288
    %v1326 = vpop.f32.mrf.mxu0
    %v1327 = vadd.f32 0.0, %v1326
    %v1328 = vpop.f32.mrf.mxu0
    %v1329 = vadd.f32 0.0, %v1328
    %1330 = vmatmul.bf16.gmra.mxu0 %v1291
    %v1331 = vpop.f32.mrf.mxu0
    %v1332 = vadd.f32 0.0, %v1331
    %v1333 = vpop.f32.mrf.mxu0
    %v1334 = vadd.f32 0.0, %v1333
    %1335 = vmatmul.bf16.gmra.mxu0 %v1294
    %v1336 = vpop.f32.mrf.mxu0
    %v1337 = vadd.f32 0.0, %v1336
    %v1338 = vpop.f32.mrf.mxu0
    %v1339 = vadd.f32 0.0, %v1338
    %1340 = vmatmul.bf16.gmra.mxu0 %v1297
    %v1341 = vpop.f32.mrf.mxu0
    %v1342 = vadd.f32 0.0, %v1341
    %v1343 = vpop.f32.mrf.mxu0
    %v1344 = vadd.f32 0.0, %v1343
    %1345 = vmatmul.bf16.gmra.mxu0 %v1300
    %v1346 = vpop.f32.mrf.mxu0
    %v1347 = vadd.f32 0.0, %v1346
    %v1348 = vpop.f32.mrf.mxu0
    %v1349 = vadd.f32 0.0, %v1348
    %1350 = vdwg.mxu0
    %v1351 = vadd.f32 %v1220, %v1312
    %v1352 = vadd.f32 %v1221, %v1314
    %v1353 = vadd.f32 %v1222, %v1317
    %v1354 = vadd.f32 %v1223, %v1319
    %v1355 = vadd.f32 %v1224, %v1322
    %v1356 = vadd.f32 %v1225, %v1324
    %v1357 = vadd.f32 %v1226, %v1327
    %v1358 = vadd.f32 %v1227, %v1329
    %v1359 = vadd.f32 %v1228, %v1332
    %v1360 = vadd.f32 %v1229, %v1334
    %v1361 = vadd.f32 %v1230, %v1337
    %v1362 = vadd.f32 %v1231, %v1339
    %v1363 = vadd.f32 %v1232, %v1342
    %v1364 = vadd.f32 %v1233, %v1344
    %v1365 = vadd.f32 %v1234, %v1347
    %v1366 = vadd.f32 %v1235, %v1349
    %s1367 = scalar_lea.vmem [#allocation2], 336
    %v1368 = vld [vmem:[%s1367] sm:$0xff]
    %v1369 = vld [vmem:[%s1367 + $0x8] sm:$0xff]
    %v1370 = vld [vmem:[%s1367 + $0x10] sm:$0xff]
    %v1371 = vld [vmem:[%s1367 + $0x18] sm:$0xff]
    %v1372 = vld [vmem:[%s1367 + $0x20] sm:$0xff]
    %v1373 = vld [vmem:[%s1367 + $0x28] sm:$0xff]
    %v1374 = vld [vmem:[%s1367 + $0x30] sm:$0xff]
    %v1375 = vld [vmem:[%s1367 + $0x38] sm:$0xff]
    %v1376 = vld [vmem:[%s1367 + $0x50] sm:$0xff]
    %v1377 = vld [vmem:[%s1367 + $0x58] sm:$0xff]
    %v1378 = vld [vmem:[%s1367 + $0x60] sm:$0xff]
    %v1379 = vld [vmem:[%s1367 + $0x68] sm:$0xff]
    %v1380 = vld [vmem:[%s1367 + $0x70] sm:$0xff]
    %v1381 = vld [vmem:[%s1367 + $0x78] sm:$0xff]
    %v1382 = vld [vmem:[%s1367 + $0x80] sm:$0xff]
    %v1383 = vld [vmem:[%s1367 + $0x88] sm:$0xff]
    %v1384 = vpack.c.bf16 %v1369, %v1368
    %v1385 = vpack.c.bf16 %v1371, %v1370
    %v1386 = vpack.c.bf16 %v1373, %v1372
    %v1387 = vpack.c.bf16 %v1375, %v1374
    %v1388 = vpack.c.bf16 %v1377, %v1376
    %v1389 = vpack.c.bf16 %v1379, %v1378
    %v1390 = vpack.c.bf16 %v1381, %v1380
    %v1391 = vpack.c.bf16 %v1383, %v1382
    %s1392 = scalar_lea.vmem [#allocation6], 128
    %v1393 = vld [vmem:[%s1392] sm:$0xf]
    %v1394 = vld [vmem:[%s1392 + $0x4] sm:$0xf]
    %v1395 = vld [vmem:[%s1392 + $0x8] sm:$0xf]
    %v1396 = vld [vmem:[%s1392 + $0xc] sm:$0xf]
    %v1401 = vunpack.c.l.b16 %v1393
    %v1402 = vunpack.c.l.b16 %v1394
    %v1403 = vunpack.c.l.b16 %v1395
    %v1404 = vunpack.c.l.b16 %v1396
    %v1405 = vpack.c.b16 %v1402, %v1401
    %v1406 = vpack.c.b16 %v1404, %v1403
    %v1410 = vsel %vm248, %v1384, 0
    %v1413 = vsel %vm248, %v1385, 0
    %v1416 = vsel %vm248, %v1386, 0
    %v1419 = vsel %vm248, %v1387, 0
    %v1422 = vsel %vm248, %v1388, 0
    %v1425 = vsel %vm248, %v1389, 0
    %v1428 = vsel %vm248, %v1390, 0
    %v1431 = vsel %vm248, %v1391, 0
    %1433 = vmatpush.bf16.msra.mxu0 0
    %1434 = vmatpush.bf16.msra.mxu0 0
    %1435 = vmatpush.bf16.msra.mxu0 0
    %1436 = vmatpush.bf16.msra.mxu0 0
    %1437 = vmatpush.bf16.msra.mxu0 0
    %1438 = vmatpush.bf16.msra.mxu0 0
    %1439 = vmatpush.bf16.msra.mxu0 %v1406
    %1440 = vmatpush.bf16.msra.mxu0 %v1405
    %1441 = vmatmul.bf16.gmra.mxu0 %v1410
    %v1442 = vpop.f32.mrf.mxu0
    %v1443 = vadd.f32 0.0, %v1442
    %v1444 = vpop.f32.mrf.mxu0
    %v1445 = vadd.f32 0.0, %v1444
    %1446 = vmatmul.bf16.gmra.mxu0 %v1413
    %v1447 = vpop.f32.mrf.mxu0
    %v1448 = vadd.f32 0.0, %v1447
    %v1449 = vpop.f32.mrf.mxu0
    %v1450 = vadd.f32 0.0, %v1449
    %1451 = vmatmul.bf16.gmra.mxu0 %v1416
    %v1452 = vpop.f32.mrf.mxu0
    %v1453 = vadd.f32 0.0, %v1452
    %v1454 = vpop.f32.mrf.mxu0
    %v1455 = vadd.f32 0.0, %v1454
    %1456 = vmatmul.bf16.gmra.mxu0 %v1419
    %v1457 = vpop.f32.mrf.mxu0
    %v1458 = vadd.f32 0.0, %v1457
    %v1459 = vpop.f32.mrf.mxu0
    %v1460 = vadd.f32 0.0, %v1459
    %1461 = vmatmul.bf16.gmra.mxu0 %v1422
    %v1462 = vpop.f32.mrf.mxu0
    %v1463 = vadd.f32 0.0, %v1462
    %v1464 = vpop.f32.mrf.mxu0
    %v1465 = vadd.f32 0.0, %v1464
    %1466 = vmatmul.bf16.gmra.mxu0 %v1425
    %v1467 = vpop.f32.mrf.mxu0
    %v1468 = vadd.f32 0.0, %v1467
    %v1469 = vpop.f32.mrf.mxu0
    %v1470 = vadd.f32 0.0, %v1469
    %1471 = vmatmul.bf16.gmra.mxu0 %v1428
    %v1472 = vpop.f32.mrf.mxu0
    %v1473 = vadd.f32 0.0, %v1472
    %v1474 = vpop.f32.mrf.mxu0
    %v1475 = vadd.f32 0.0, %v1474
    %1476 = vmatmul.bf16.gmra.mxu0 %v1431
    %v1477 = vpop.f32.mrf.mxu0
    %v1478 = vadd.f32 0.0, %v1477
    %v1479 = vpop.f32.mrf.mxu0
    %v1480 = vadd.f32 0.0, %v1479
    %1481 = vdwg.mxu0
    %v1482 = vadd.f32 %v1351, %v1443
    %v1483 = vadd.f32 %v1352, %v1445
    %v1484 = vadd.f32 %v1353, %v1448
    %v1485 = vadd.f32 %v1354, %v1450
    %v1486 = vadd.f32 %v1355, %v1453
    %v1487 = vadd.f32 %v1356, %v1455
    %v1488 = vadd.f32 %v1357, %v1458
    %v1489 = vadd.f32 %v1358, %v1460
    %v1490 = vadd.f32 %v1359, %v1463
    %v1491 = vadd.f32 %v1360, %v1465
    %v1492 = vadd.f32 %v1361, %v1468
    %v1493 = vadd.f32 %v1362, %v1470
    %v1494 = vadd.f32 %v1363, %v1473
    %v1495 = vadd.f32 %v1364, %v1475
    %v1496 = vadd.f32 %v1365, %v1478
    %v1497 = vadd.f32 %v1366, %v1480
    %v1498 = vld [vmem:[%s5] sm:$0x1]
    %v1500 = vperm.slane %v1498, 0
    %v1502 = vadd.f32 %v1482, %v1500
    %v1503 = vadd.f32 %v1483, %v1500
    %v1504 = vadd.f32 %v1484, %v1500
    %v1505 = vadd.f32 %v1485, %v1500
    %v1506 = vadd.f32 %v1486, %v1500
    %v1507 = vadd.f32 %v1487, %v1500
    %v1508 = vadd.f32 %v1488, %v1500
    %v1509 = vadd.f32 %v1489, %v1500
    %v1510 = vadd.f32 %v1490, %v1500
    %v1511 = vadd.f32 %v1491, %v1500
    %v1512 = vadd.f32 %v1492, %v1500
    %v1513 = vadd.f32 %v1493, %v1500
    %v1514 = vadd.f32 %v1494, %v1500
    %v1515 = vadd.f32 %v1495, %v1500
    %v1516 = vadd.f32 %v1496, %v1500
    %v1517 = vadd.f32 %v1497, %v1500
    %v1518 = vmax.f32 %v1502, 0.0
    %v1519 = vmax.f32 %v1503, 0.0
    %v1520 = vmax.f32 %v1504, 0.0
    %v1521 = vmax.f32 %v1505, 0.0
    %v1522 = vmax.f32 %v1506, 0.0
    %v1523 = vmax.f32 %v1507, 0.0
    %v1524 = vmax.f32 %v1508, 0.0
    %v1525 = vmax.f32 %v1509, 0.0
    %v1526 = vmax.f32 %v1510, 0.0
    %v1527 = vmax.f32 %v1511, 0.0
    %v1528 = vmax.f32 %v1512, 0.0
    %v1529 = vmax.f32 %v1513, 0.0
    %v1530 = vmax.f32 %v1514, 0.0
    %v1531 = vmax.f32 %v1515, 0.0
    %v1532 = vmax.f32 %v1516, 0.0
    %v1533 = vmax.f32 %v1517, 0.0
    %v1534 = vpack.c.bf16 %v1519, %v1518
    %v1535 = vpack.c.bf16 %v1521, %v1520
    %v1536 = vpack.c.bf16 %v1523, %v1522
    %v1537 = vpack.c.bf16 %v1525, %v1524
    %v1538 = vpack.c.bf16 %v1527, %v1526
    %v1539 = vpack.c.bf16 %v1529, %v1528
    %v1540 = vpack.c.bf16 %v1531, %v1530
    %v1541 = vpack.c.bf16 %v1533, %v1532
    %v1542 = vld [vmem:[%s3] sm:$0xf]
    %v1543 = vld [vmem:[%s3 + $0x4] sm:$0xf]
    %v1544 = vld [vmem:[%s3 + $0x8] sm:$0xf]
    %v1545 = vld [vmem:[%s3 + $0xc] sm:$0xf]
    %v1546 = vld [vmem:[%s6] sm:$0x1]
    %v1548 = vperm.slane %v1546, 0
    %v1554 = vunpack.c.l.b16 %v1542
    %v1555 = vunpack.c.l.b16 %v1543
    %v1556 = vunpack.c.l.b16 %v1544
    %v1557 = vunpack.c.l.b16 %v1545
    %v1558 = vpack.c.b16 %v1555, %v1554
    %v1559 = vpack.c.b16 %v1557, %v1556
    %v1563 = vsel %vm248, %v1534, 0
    %v1566 = vsel %vm248, %v1535, 0
    %v1569 = vsel %vm248, %v1536, 0
    %v1572 = vsel %vm248, %v1537, 0
    %v1575 = vsel %vm248, %v1538, 0
    %v1578 = vsel %vm248, %v1539, 0
    %v1581 = vsel %vm248, %v1540, 0
    %v1584 = vsel %vm248, %v1541, 0
    %1586 = vmatpush.bf16.msra.mxu0 0
    %1587 = vmatpush.bf16.msra.mxu0 0
    %1588 = vmatpush.bf16.msra.mxu0 0
    %1589 = vmatpush.bf16.msra.mxu0 0
    %1590 = vmatpush.bf16.msra.mxu0 0
    %1591 = vmatpush.bf16.msra.mxu0 0
    %1592 = vmatpush.bf16.msra.mxu0 %v1559
    %1593 = vmatpush.bf16.msra.mxu0 %v1558
    %1594 = vmatmul.bf16.gmra.mxu0 %v1563
    %v1595 = vpop.f32.mrf.mxu0
    %v1596 = vadd.f32 %v1548, %v1595
    %v1597 = vpop.f32.mrf.mxu0
    %v1598 = vadd.f32 %v1548, %v1597
    %1599 = vmatmul.bf16.gmra.mxu0 %v1566
    %v1600 = vpop.f32.mrf.mxu0
    %v1601 = vadd.f32 %v1548, %v1600
    %v1602 = vpop.f32.mrf.mxu0
    %v1603 = vadd.f32 %v1548, %v1602
    %1604 = vmatmul.bf16.gmra.mxu0 %v1569
    %v1605 = vpop.f32.mrf.mxu0
    %v1606 = vadd.f32 %v1548, %v1605
    %v1607 = vpop.f32.mrf.mxu0
    %v1608 = vadd.f32 %v1548, %v1607
    %1609 = vmatmul.bf16.gmra.mxu0 %v1572
    %v1610 = vpop.f32.mrf.mxu0
    %v1611 = vadd.f32 %v1548, %v1610
    %v1612 = vpop.f32.mrf.mxu0
    %v1613 = vadd.f32 %v1548, %v1612
    %1614 = vmatmul.bf16.gmra.mxu0 %v1575
    %v1615 = vpop.f32.mrf.mxu0
    %v1616 = vadd.f32 %v1548, %v1615
    %v1617 = vpop.f32.mrf.mxu0
    %v1618 = vadd.f32 %v1548, %v1617
    %1619 = vmatmul.bf16.gmra.mxu0 %v1578
    %v1620 = vpop.f32.mrf.mxu0
    %v1621 = vadd.f32 %v1548, %v1620
    %v1622 = vpop.f32.mrf.mxu0
    %v1623 = vadd.f32 %v1548, %v1622
    %1624 = vmatmul.bf16.gmra.mxu0 %v1581
    %v1625 = vpop.f32.mrf.mxu0
    %v1626 = vadd.f32 %v1548, %v1625
    %v1627 = vpop.f32.mrf.mxu0
    %v1628 = vadd.f32 %v1548, %v1627
    %1629 = vmatmul.bf16.gmra.mxu0 %v1584
    %v1630 = vpop.f32.mrf.mxu0
    %v1631 = vadd.f32 %v1548, %v1630
    %v1632 = vpop.f32.mrf.mxu0
    %v1633 = vadd.f32 %v1548, %v1632
    %1634 = vdwg.mxu0
    %v1635 = vld [vmem:[%s7] sm:$0xf]
    %v1636 = vld [vmem:[%s7 + $0x4] sm:$0xf]
    %v1637 = vld [vmem:[%s7 + $0x8] sm:$0xf]
    %v1638 = vld [vmem:[%s7 + $0xc] sm:$0xf]
    %v1639 = vld [vmem:[%s7 + $0x10] sm:$0xf]
    %v1640 = vld [vmem:[%s7 + $0x14] sm:$0xf]
    %v1641 = vld [vmem:[%s7 + $0x18] sm:$0xf]
    %v1642 = vld [vmem:[%s7 + $0x1c] sm:$0xf]
    %v1643 = vld [vmem:[%s8] sm:$0x1]
    %v1645 = vperm.slane %v1643, 0
    %v1655 = vunpack.c.l.b16 %v1635
    %v1656 = vunpack.c.l.b16 %v1636
    %v1657 = vunpack.c.l.b16 %v1637
    %v1658 = vunpack.c.l.b16 %v1638
    %v1659 = vunpack.c.l.b16 %v1639
    %v1660 = vunpack.c.l.b16 %v1640
    %v1661 = vunpack.c.l.b16 %v1641
    %v1662 = vunpack.c.l.b16 %v1642
    %v1663 = vpack.c.b16 %v1656, %v1655
    %v1664 = vpack.c.b16 %v1658, %v1657
    %v1665 = vpack.c.b16 %v1660, %v1659
    %v1666 = vpack.c.b16 %v1662, %v1661
    %1671 = vmatpush.bf16.msra.mxu0 0
    %1672 = vmatpush.bf16.msra.mxu0 0
    %1673 = vmatpush.bf16.msra.mxu0 0
    %1674 = vmatpush.bf16.msra.mxu0 0
    %1675 = vmatpush.bf16.msra.mxu0 %v1666
    %1676 = vmatpush.bf16.msra.mxu0 %v1665
    %1677 = vmatpush.bf16.msra.mxu0 %v1664
    %1678 = vmatpush.bf16.msra.mxu0 %v1663
    %1679 = vmatmul.bf16.gmra.mxu0 %v160
    %v1680 = vpop.f32.mrf.mxu0
    %v1681 = vadd.f32 %v1645, %v1680
    %v1682 = vpop.f32.mrf.mxu0
    %v1683 = vadd.f32 %v1645, %v1682
    %1684 = vmatmul.bf16.gmra.mxu0 %v163
    %v1685 = vpop.f32.mrf.mxu0
    %v1686 = vadd.f32 %v1645, %v1685
    %v1687 = vpop.f32.mrf.mxu0
    %v1688 = vadd.f32 %v1645, %v1687
    %1689 = vmatmul.bf16.gmra.mxu0 %v166
    %v1690 = vpop.f32.mrf.mxu0
    %v1691 = vadd.f32 %v1645, %v1690
    %v1692 = vpop.f32.mrf.mxu0
    %v1693 = vadd.f32 %v1645, %v1692
    %1694 = vmatmul.bf16.gmra.mxu0 %v169
    %v1695 = vpop.f32.mrf.mxu0
    %v1696 = vadd.f32 %v1645, %v1695
    %v1697 = vpop.f32.mrf.mxu0
    %v1698 = vadd.f32 %v1645, %v1697
    %1699 = vmatmul.bf16.gmra.mxu0 %v172
    %v1700 = vpop.f32.mrf.mxu0
    %v1701 = vadd.f32 %v1645, %v1700
    %v1702 = vpop.f32.mrf.mxu0
    %v1703 = vadd.f32 %v1645, %v1702
    %1704 = vmatmul.bf16.gmra.mxu0 %v175
    %v1705 = vpop.f32.mrf.mxu0
    %v1706 = vadd.f32 %v1645, %v1705
    %v1707 = vpop.f32.mrf.mxu0
    %v1708 = vadd.f32 %v1645, %v1707
    %1709 = vmatmul.bf16.gmra.mxu0 %v178
    %v1710 = vpop.f32.mrf.mxu0
    %v1711 = vadd.f32 %v1645, %v1710
    %v1712 = vpop.f32.mrf.mxu0
    %v1713 = vadd.f32 %v1645, %v1712
    %1714 = vmatmul.bf16.gmra.mxu0 %v181
    %v1715 = vpop.f32.mrf.mxu0
    %v1716 = vadd.f32 %v1645, %v1715
    %v1717 = vpop.f32.mrf.mxu0
    %v1718 = vadd.f32 %v1645, %v1717
    %1719 = vdwg.mxu0
    %v1720 = vadd.f32 %v1596, %v1681
    %v1721 = vadd.f32 %v1598, %v1683
    %v1722 = vadd.f32 %v1601, %v1686
    %v1723 = vadd.f32 %v1603, %v1688
    %v1724 = vadd.f32 %v1606, %v1691
    %v1725 = vadd.f32 %v1608, %v1693
    %v1726 = vadd.f32 %v1611, %v1696
    %v1727 = vadd.f32 %v1613, %v1698
    %v1728 = vadd.f32 %v1616, %v1701
    %v1729 = vadd.f32 %v1618, %v1703
    %v1730 = vadd.f32 %v1621, %v1706
    %v1731 = vadd.f32 %v1623, %v1708
    %v1732 = vadd.f32 %v1626, %v1711
    %v1733 = vadd.f32 %v1628, %v1713
    %v1734 = vadd.f32 %v1631, %v1716
    %v1735 = vadd.f32 %v1633, %v1718
    %v1736 = vmax.f32 %v1720, 0.0
    %v1737 = vmax.f32 %v1721, 0.0
    %v1738 = vmax.f32 %v1722, 0.0
    %v1739 = vmax.f32 %v1723, 0.0
    %v1740 = vmax.f32 %v1724, 0.0
    %v1741 = vmax.f32 %v1725, 0.0
    %v1742 = vmax.f32 %v1726, 0.0
    %v1743 = vmax.f32 %v1727, 0.0
    %v1744 = vmax.f32 %v1728, 0.0
    %v1745 = vmax.f32 %v1729, 0.0
    %v1746 = vmax.f32 %v1730, 0.0
    %v1747 = vmax.f32 %v1731, 0.0
    %v1748 = vmax.f32 %v1732, 0.0
    %v1749 = vmax.f32 %v1733, 0.0
    %v1750 = vmax.f32 %v1734, 0.0
    %v1751 = vmax.f32 %v1735, 0.0
    %1752 = vst [vmem:[#allocation8] sm:$0xff] %v1736
    %1753 = vst [vmem:[#allocation8 + $0x8] sm:$0xff] %v1737
    %1754 = vst [vmem:[#allocation8 + $0x10] sm:$0xff] %v1738
    %1755 = vst [vmem:[#allocation8 + $0x18] sm:$0xff] %v1739
    %1756 = vst [vmem:[#allocation8 + $0x20] sm:$0xff] %v1740
    %1757 = vst [vmem:[#allocation8 + $0x28] sm:$0xff] %v1741
    %1758 = vst [vmem:[#allocation8 + $0x30] sm:$0xff] %v1742
    %1759 = vst [vmem:[#allocation8 + $0x38] sm:$0xff] %v1743
    %1760 = vst [vmem:[#allocation8 + $0x40] sm:$0xff] %v1744
    %1761 = vst [vmem:[#allocation8 + $0x48] sm:$0xff] %v1745
    %1762 = vst [vmem:[#allocation8 + $0x50] sm:$0xff] %v1746
    %1763 = vst [vmem:[#allocation8 + $0x58] sm:$0xff] %v1747
    %1764 = vst [vmem:[#allocation8 + $0x60] sm:$0xff] %v1748
    %1765 = vst [vmem:[#allocation8 + $0x68] sm:$0xff] %v1749
    %1766 = vst [vmem:[#allocation8 + $0x70] sm:$0xff] %v1750
    %1767 = vst [vmem:[#allocation8 + $0x78] sm:$0xff] %v1751
    // Predicated region
    $region46: #{tpu_custom_call.1} parent=1 // pred_check
      _
    $region47: #{tpu_custom_call.1} parent=1 // pred_check_branch
      %1769 = sbr.rel (0) target = $region49
    $region48: #{tpu_custom_call.1} parent=1 // pred_region
      %1771 = vsyncadd [#allocation5], 0
      %s1772 = sshll.u32 [#allocation8], 4
      %s1773 = int_to_ptr.vmem [resolvable:$true] %s1772
      %s1774 = sshll.u32 %s9, 4
      %s1775 = int_to_ptr.hbm [resolvable:$true] %s1774
      %1780 = dma.vmem_to_hbm [thread:$0]  %s1773, 2048, %s1775, [#allocation5], 128, 128, 8
    $region49: #{tpu_custom_call.1} parent=1 // pred_fallthru
      _
    // Predicated region
    $region50: #{tpu_custom_call.1} parent=1 // pred_check
      _
    $region51: #{tpu_custom_call.1} parent=1 // pred_check_branch
      %1782 = sbr.rel (0) target = $region53
    $region52: #{tpu_custom_call.1} parent=1 // pred_region
      %1784 = dma.done [#allocation5], 2048
    $region53: #{tpu_custom_call.1} parent=1 // pred_fallthru
      _
    %1785 = vsyncpa [#allocation4], 1
    %1786 = vsyncpa [#allocation7], 1
    %1787 = vsyncpa [#allocation5], 1

</llo_original>
